<compile_context>
chip_gen: v7x
topology: tpu7x:2x2x1
jax: 0.10.0
libtpu: 0.0.40
codegen_flags: <defaults>
</compile_context>

<pallas_src>
import functools

import numpy as np
import jax
import jax.numpy as jnp
from jax import lax
from jax.experimental import pallas as pl
from jax.experimental.pallas import tpu as pltpu  # noqa: F401  (kept for scaling variants)


# ----------------------------- Pallas kernel -------------------------------- #
def critic_kernel(x_ref, wih_ref, whh_ref, blstm_ref,
                  w1_ref, b1_ref, w2_ref, b2_ref, w3_ref, b3_ref,
                  val_ref, *, B, T):
    H = whh_ref.shape[0]

    # ---- input-to-hidden projection for ALL timesteps in one MXU pass.
    # Rows are time-major (row = t*B + b).  The 0.5 gate pre-scale of the
    # sigmoid->tanh rewrite is already folded into wih/whh/blstm by the wrapper.
    gx = jnp.dot(x_ref[...], wih_ref[...],
                 preferred_element_type=jnp.float32) + blstm_ref[...]   # (T*B, 4H)

    whh = whh_ref[...]

    # Post-tanh affine constants (hoisted, built once from a 2-D iota):
    #   sigmoid(x) = 0.5 * tanh(0.5*x) + 0.5  for the i/f/o gates,
    #   plain tanh for the g gate.  PyTorch gate order is [i, f, g, o].
    col = lax.broadcasted_iota(jnp.int32, (1, 4 * H), 1)
    is_g = (col >= 2 * H) & (col < 3 * H)
    p_vec = jnp.where(is_g, 1.0, 0.5).astype(jnp.float32)
    q_vec = jnp.where(is_g, 0.0, 0.5).astype(jnp.float32)

    # get_init_state: zero recurrent cell.
    h = jnp.zeros((B, H), jnp.float32)
    c = jnp.zeros((B, H), jnp.float32)

    hs = []
    # T=8: statically unrolled serial recurrence (the only serial dependence).
    # TODO(synk): for T >> 16 switch to lax.fori_loop(..., unroll=k) + a VMEM
    # hidden slab to bound vreg live ranges / code size.
    # TODO(synk): pltpu.matmul_push_rhs / matmul_acc_lhs could keep W_hh staged
    # in the MXU across the 8 steps; kept on jnp.dot here for lowering
    # robustness at the tiny (2, 32) x (32, 128) shape.
    for t in range(T):
        gates = gx[t * B:(t + 1) * B, :] + jnp.dot(
            h, whh, preferred_element_type=jnp.float32)
        act = jnp.tanh(gates) * p_vec + q_vec          # single EUP push per step
        i_g = act[:, 0 * H:1 * H]
        f_g = act[:, 1 * H:2 * H]
        g_g = act[:, 2 * H:3 * H]
        o_g = act[:, 3 * H:4 * H]
        c = f_g * c + i_g * g_g
        h = o_g * jnp.tanh(c)
        hs.append(h)                                    # stays in vregs (2 KiB total)

    # ---- MLP head ONCE over all T*B (time-major) rows.
    h_all = jnp.concatenate(hs, axis=0)                 # (T*B, H), no VMEM round-trip
    z1 = jnp.maximum(
        jnp.dot(h_all, w1_ref[...], preferred_element_type=jnp.float32) + b1_ref[...], 0.0)
    z2 = jnp.maximum(
        jnp.dot(z1, w2_ref[...], preferred_element_type=jnp.float32) + b2_ref[...], 0.0)
    # N=1 value head as VPU multiply + lane reduction (avoids a 1-valid-lane
    # MXU pass and its drain at the kernel tail).
    v = jnp.sum(z2 * w3_ref[...], axis=-1, keepdims=True) + b3_ref[...]
    val_ref[...] = v                                     # single (T*B, 1) store


def critic_forward(state_btd, params, hidden_size):
    """state_btd: (B, T, D) float32. Returns value of shape (B*T,) (batch-major)."""
    B, T, D = state_btd.shape
    H = hidden_size
    wih, whh, blstm, w1, b1, w2, b2, w3, b3 = params

    # One-time weight/layout folding (tiny XLA ops, outside the kernel):
    #  * pre-scale the sigmoid gate columns (i, f, o) by 0.5 so the kernel runs
    #    a single tanh over all 4H gate columns per step,
    #  * time-major input layout so each step reads a contiguous row slab,
    #  * value-head weight as a (1, H) row for the in-kernel VPU reduce.
    s_vec = np.concatenate([np.full(2 * H, 0.5), np.ones(H),
                            np.full(H, 0.5)]).astype(np.float32)[None, :]
    wih_s = wih * s_vec
    whh_s = whh * s_vec
    blstm_s = blstm * s_vec
    x_tm = state_btd.transpose(1, 0, 2).reshape(T * B, D)       # row = t*B + b
    w3_row = w3.reshape(1, H)

    out = pl.pallas_call(
        functools.partial(critic_kernel, B=B, T=T),
        out_shape=jax.ShapeDtypeStruct((T * B, 1), jnp.float32),
        # No grid: at these shapes (<1 MiB total) one invocation beats any
        # pipeline (per-grid-step overhead ~0.35us dwarfs one step's compute).
        # TODO(synk): for production B*T, pack extra sequences along the batch
        # (M) dim first; only when VMEM forces it add a "parallel" batch grid
        # (on v7x: 2 TCs share 64 MiB VMEM -> roughly half the row tile of the
        # 128 MiB v5e/v6e parts).
    )(x_tm, wih_s, whh_s, blstm_s, w1, b1, w2, b2, w3_row, b3)

    # time-major (t*B + b) rows -> batch-major (b*T + t), matching torch's
    # (B, T, H).reshape(B*T, H) row order.  Free XLA reshape/transpose.
    return out.reshape(T, B).T.reshape(-1)


# --------------------------- parameter construction ------------------------- #
def orthogonal(key, rows, cols, gain=1.0):
    n = max(rows, cols)
    a = jax.random.normal(key, (n, n), dtype=jnp.float32)
    q, r = jnp.linalg.qr(a)
    q = q * jnp.sign(jnp.diag(r))[None, :]
    return gain * q[:rows, :cols]


def make_params(key, state_dim, hidden_size):
    D, H = state_dim, hidden_size
    ks = jax.random.split(key, 8)
    # LSTM: weight_ih (4H, D), weight_hh (4H, H), orthogonal gain 1, biases zero.
    wih = orthogonal(ks[0], 4 * H, D, 1.0).T                 # stored transposed (D, 4H)
    whh = orthogonal(ks[1], 4 * H, H, 1.0).T                 # (H, 4H)
    blstm = jnp.zeros((1, 4 * H), jnp.float32)               # b_ih + b_hh = 0 at init
    # layer_hidden / lin_value: orthogonal gain sqrt(2), default uniform bias.
    w1 = orthogonal(ks[2], H, H, float(np.sqrt(2))).T
    b1 = jax.random.uniform(ks[3], (1, H), jnp.float32,
                            -1.0 / np.sqrt(H), 1.0 / np.sqrt(H))
    w2 = orthogonal(ks[4], H, H, float(np.sqrt(2))).T
    b2 = jax.random.uniform(ks[5], (1, H), jnp.float32,
                            -1.0 / np.sqrt(H), 1.0 / np.sqrt(H))
    # value_layer: (1, H) orthogonal gain 1, default uniform bias.
    w3 = orthogonal(ks[6], 1, H, 1.0).T                      # (H, 1)
    b3 = jax.random.uniform(ks[7], (1, 1), jnp.float32,
                            -1.0 / np.sqrt(H), 1.0 / np.sqrt(H))
    return (wih, whh, blstm, w1, b1, w2, b2, w3, b3)


# ------------------------------ pure-JAX reference --------------------------- #
def reference_forward(state_btd, params, hidden_size):
    wih, whh, blstm, w1, b1, w2, b2, w3, b3 = params
    B, T, D = state_btd.shape
    H = hidden_size
    h = jnp.zeros((B, H), jnp.float32)
    c = jnp.zeros((B, H), jnp.float32)
    hs = []
    for t in range(T):
        gates = (state_btd[:, t] @ wih + blstm) + h @ whh
        i_g = jax.nn.sigmoid(gates[:, 0 * H:1 * H])
        f_g = jax.nn.sigmoid(gates[:, 1 * H:2 * H])
        g_g = jnp.tanh(gates[:, 2 * H:3 * H])
        o_g = jax.nn.sigmoid(gates[:, 3 * H:4 * H])
        c = f_g * c + i_g * g_g
        h = o_g * jnp.tanh(c)
        hs.append(h)
    out = jnp.stack(hs, axis=1).reshape(B * T, H)            # batch-major rows
    z1 = jnp.maximum(out @ w1 + b1, 0.0)
    z2 = jnp.maximum(z1 @ w2 + b2, 0.0)
    return (z2 @ w3 + b3).reshape(-1)


# ----------------------------------- main ------------------------------------ #
if __name__ == "__main__":
    # module config: large_state_dim=40, small_state_dim=8, n_agents=3, hidden=32
    large_state_dim, small_state_dim, n_agents, hidden_size = 40, 8, 3, 32
    state_dim = large_state_dim + small_state_dim * (n_agents - 1)   # 56
    B, T = 2, 8

    key = jax.random.PRNGKey(0)
    k_param, k_state = jax.random.split(key)
    params = make_params(k_param, state_dim, hidden_size)
    state = jax.random.normal(k_state, (B, T, state_dim), dtype=jnp.float32)

    value = critic_forward(state, params, hidden_size)
    value = jax.block_until_ready(value)

    ref = reference_forward(state, params, hidden_size)
    np.testing.assert_allclose(np.asarray(value), np.asarray(ref),
                               rtol=1e-5, atol=3e-5)
    assert value.shape == (B * T,)
    print("KERNEL_OK")
</pallas_src>

<mosaic_0001>
module attributes {stable_mosaic.version = 11 : i64} {
  func.func @critic_kernel(%arg0: memref<16x56xf32, #tpu.memory_space<vmem>>, %arg1: memref<56x128xf32, #tpu.memory_space<vmem>>, %arg2: memref<32x128xf32, #tpu.memory_space<vmem>>, %arg3: memref<1x128xf32, #tpu.memory_space<vmem>>, %arg4: memref<32x32xf32, #tpu.memory_space<vmem>>, %arg5: memref<1x32xf32, #tpu.memory_space<vmem>>, %arg6: memref<32x32xf32, #tpu.memory_space<vmem>>, %arg7: memref<1x32xf32, #tpu.memory_space<vmem>>, %arg8: memref<1x32xf32, #tpu.memory_space<vmem>>, %arg9: memref<1x1xf32, #tpu.memory_space<vmem>>, %arg10: memref<16x1xf32, #tpu.memory_space<vmem>>) attributes {dimension_semantics = [], scalar_prefetch = 0 : i64, scratch_operands = 0 : i64, tpu.core_type = #tpu.core_type<tc>} {
    %c0 = arith.constant 0 : index
    %c0_0 = arith.constant 0 : index
    %0 = vector.load %arg0[%c0, %c0_0] : memref<16x56xf32, #tpu.memory_space<vmem>>, vector<16x56xf32>
    %c0_1 = arith.constant 0 : index
    %c0_2 = arith.constant 0 : index
    %1 = vector.load %arg1[%c0_1, %c0_2] : memref<56x128xf32, #tpu.memory_space<vmem>>, vector<56x128xf32>
    %cst = arith.constant dense<0.000000e+00> : vector<16x128xf32>
    %2 = tpu.matmul %0, %1, %cst {dimension_numbers = #tpu.dot_dimension_numbers<[1], [0], [0], [1], [0, 0, 1, 1], [], []>} : vector<16x56xf32>, vector<56x128xf32>, vector<16x128xf32> -> vector<16x128xf32>
    %c0_3 = arith.constant 0 : index
    %c0_4 = arith.constant 0 : index
    %3 = vector.load %arg3[%c0_3, %c0_4] : memref<1x128xf32, #tpu.memory_space<vmem>>, vector<1x128xf32>
    %4 = vector.broadcast %3 : vector<1x128xf32> to vector<16x128xf32>
    %5 = arith.addf %2, %4 : vector<16x128xf32>
    %c0_5 = arith.constant 0 : index
    %c0_6 = arith.constant 0 : index
    %6 = vector.load %arg2[%c0_5, %c0_6] : memref<32x128xf32, #tpu.memory_space<vmem>>, vector<32x128xf32>
    %7 = tpu.iota {dimensions = array<i32: 1>} : vector<1x128xi32>
    %c64_i32 = arith.constant 64 : i32
    %8 = vector.broadcast %c64_i32 : i32 to vector<1x128xi32>
    %9 = arith.cmpi sge, %7, %8 : vector<1x128xi32>
    %c96_i32 = arith.constant 96 : i32
    %10 = vector.broadcast %c96_i32 : i32 to vector<1x128xi32>
    %11 = arith.cmpi slt, %7, %10 : vector<1x128xi32>
    %12 = arith.andi %9, %11 : vector<1x128xi1>
    %cst_7 = arith.constant 1.000000e+00 : f32
    %cst_8 = arith.constant 5.000000e-01 : f32
    %13 = vector.broadcast %cst_7 : f32 to vector<1x128xf32>
    %14 = vector.broadcast %cst_8 : f32 to vector<1x128xf32>
    %15 = arith.select %12, %13, %14 : vector<1x128xi1>, vector<1x128xf32>
    %cst_9 = arith.constant 0.000000e+00 : f32
    %cst_10 = arith.constant 5.000000e-01 : f32
    %16 = vector.broadcast %cst_9 : f32 to vector<1x128xf32>
    %17 = vector.broadcast %cst_10 : f32 to vector<1x128xf32>
    %18 = arith.select %12, %16, %17 : vector<1x128xi1>, vector<1x128xf32>
    %cst_11 = arith.constant 0.000000e+00 : f32
    %19 = vector.broadcast %cst_11 : f32 to vector<2x32xf32>
    %cst_12 = arith.constant 0.000000e+00 : f32
    %20 = vector.broadcast %cst_12 : f32 to vector<2x32xf32>
    %21 = vector.extract_strided_slice %5 {offsets = [0, 0], sizes = [2, 128], strides = [1, 1]} : vector<16x128xf32> to vector<2x128xf32>
    %cst_13 = arith.constant dense<0.000000e+00> : vector<2x128xf32>
    %22 = tpu.matmul %19, %6, %cst_13 {dimension_numbers = #tpu.dot_dimension_numbers<[1], [0], [0], [1], [0, 0, 1, 1], [], []>} : vector<2x32xf32>, vector<32x128xf32>, vector<2x128xf32> -> vector<2x128xf32>
    %23 = arith.addf %21, %22 : vector<2x128xf32>
    %24 = math.tanh %23 : vector<2x128xf32>
    %25 = vector.broadcast %15 : vector<1x128xf32> to vector<2x128xf32>
    %26 = arith.mulf %24, %25 : vector<2x128xf32>
    %27 = vector.broadcast %18 : vector<1x128xf32> to vector<2x128xf32>
    %28 = arith.addf %26, %27 : vector<2x128xf32>
    %29 = vector.extract_strided_slice %28 {offsets = [0, 0], sizes = [2, 32], strides = [1, 1]} : vector<2x128xf32> to vector<2x32xf32>
    %30 = vector.extract_strided_slice %28 {offsets = [0, 32], sizes = [2, 32], strides = [1, 1]} : vector<2x128xf32> to vector<2x32xf32>
    %31 = vector.extract_strided_slice %28 {offsets = [0, 64], sizes = [2, 32], strides = [1, 1]} : vector<2x128xf32> to vector<2x32xf32>
    %32 = vector.extract_strided_slice %28 {offsets = [0, 96], sizes = [2, 32], strides = [1, 1]} : vector<2x128xf32> to vector<2x32xf32>
    %33 = arith.mulf %30, %20 : vector<2x32xf32>
    %34 = arith.mulf %29, %31 : vector<2x32xf32>
    %35 = arith.addf %33, %34 : vector<2x32xf32>
    %36 = math.tanh %35 : vector<2x32xf32>
    %37 = arith.mulf %32, %36 : vector<2x32xf32>
    %38 = vector.extract_strided_slice %5 {offsets = [2, 0], sizes = [2, 128], strides = [1, 1]} : vector<16x128xf32> to vector<2x128xf32>
    %cst_14 = arith.constant dense<0.000000e+00> : vector<2x128xf32>
    %39 = tpu.matmul %37, %6, %cst_14 {dimension_numbers = #tpu.dot_dimension_numbers<[1], [0], [0], [1], [0, 0, 1, 1], [], []>} : vector<2x32xf32>, vector<32x128xf32>, vector<2x128xf32> -> vector<2x128xf32>
    %40 = arith.addf %38, %39 : vector<2x128xf32>
    %41 = math.tanh %40 : vector<2x128xf32>
    %42 = vector.broadcast %15 : vector<1x128xf32> to vector<2x128xf32>
    %43 = arith.mulf %41, %42 : vector<2x128xf32>
    %44 = vector.broadcast %18 : vector<1x128xf32> to vector<2x128xf32>
    %45 = arith.addf %43, %44 : vector<2x128xf32>
    %46 = vector.extract_strided_slice %45 {offsets = [0, 0], sizes = [2, 32], strides = [1, 1]} : vector<2x128xf32> to vector<2x32xf32>
    %47 = vector.extract_strided_slice %45 {offsets = [0, 32], sizes = [2, 32], strides = [1, 1]} : vector<2x128xf32> to vector<2x32xf32>
    %48 = vector.extract_strided_slice %45 {offsets = [0, 64], sizes = [2, 32], strides = [1, 1]} : vector<2x128xf32> to vector<2x32xf32>
    %49 = vector.extract_strided_slice %45 {offsets = [0, 96], sizes = [2, 32], strides = [1, 1]} : vector<2x128xf32> to vector<2x32xf32>
    %50 = arith.mulf %47, %35 : vector<2x32xf32>
    %51 = arith.mulf %46, %48 : vector<2x32xf32>
    %52 = arith.addf %50, %51 : vector<2x32xf32>
    %53 = math.tanh %52 : vector<2x32xf32>
    %54 = arith.mulf %49, %53 : vector<2x32xf32>
    %55 = vector.extract_strided_slice %5 {offsets = [4, 0], sizes = [2, 128], strides = [1, 1]} : vector<16x128xf32> to vector<2x128xf32>
    %cst_15 = arith.constant dense<0.000000e+00> : vector<2x128xf32>
    %56 = tpu.matmul %54, %6, %cst_15 {dimension_numbers = #tpu.dot_dimension_numbers<[1], [0], [0], [1], [0, 0, 1, 1], [], []>} : vector<2x32xf32>, vector<32x128xf32>, vector<2x128xf32> -> vector<2x128xf32>
    %57 = arith.addf %55, %56 : vector<2x128xf32>
    %58 = math.tanh %57 : vector<2x128xf32>
    %59 = vector.broadcast %15 : vector<1x128xf32> to vector<2x128xf32>
    %60 = arith.mulf %58, %59 : vector<2x128xf32>
    %61 = vector.broadcast %18 : vector<1x128xf32> to vector<2x128xf32>
    %62 = arith.addf %60, %61 : vector<2x128xf32>
    %63 = vector.extract_strided_slice %62 {offsets = [0, 0], sizes = [2, 32], strides = [1, 1]} : vector<2x128xf32> to vector<2x32xf32>
    %64 = vector.extract_strided_slice %62 {offsets = [0, 32], sizes = [2, 32], strides = [1, 1]} : vector<2x128xf32> to vector<2x32xf32>
    %65 = vector.extract_strided_slice %62 {offsets = [0, 64], sizes = [2, 32], strides = [1, 1]} : vector<2x128xf32> to vector<2x32xf32>
    %66 = vector.extract_strided_slice %62 {offsets = [0, 96], sizes = [2, 32], strides = [1, 1]} : vector<2x128xf32> to vector<2x32xf32>
    %67 = arith.mulf %64, %52 : vector<2x32xf32>
    %68 = arith.mulf %63, %65 : vector<2x32xf32>
    %69 = arith.addf %67, %68 : vector<2x32xf32>
    %70 = math.tanh %69 : vector<2x32xf32>
    %71 = arith.mulf %66, %70 : vector<2x32xf32>
    %72 = vector.extract_strided_slice %5 {offsets = [6, 0], sizes = [2, 128], strides = [1, 1]} : vector<16x128xf32> to vector<2x128xf32>
    %cst_16 = arith.constant dense<0.000000e+00> : vector<2x128xf32>
    %73 = tpu.matmul %71, %6, %cst_16 {dimension_numbers = #tpu.dot_dimension_numbers<[1], [0], [0], [1], [0, 0, 1, 1], [], []>} : vector<2x32xf32>, vector<32x128xf32>, vector<2x128xf32> -> vector<2x128xf32>
    %74 = arith.addf %72, %73 : vector<2x128xf32>
    %75 = math.tanh %74 : vector<2x128xf32>
    %76 = vector.broadcast %15 : vector<1x128xf32> to vector<2x128xf32>
    %77 = arith.mulf %75, %76 : vector<2x128xf32>
    %78 = vector.broadcast %18 : vector<1x128xf32> to vector<2x128xf32>
    %79 = arith.addf %77, %78 : vector<2x128xf32>
    %80 = vector.extract_strided_slice %79 {offsets = [0, 0], sizes = [2, 32], strides = [1, 1]} : vector<2x128xf32> to vector<2x32xf32>
    %81 = vector.extract_strided_slice %79 {offsets = [0, 32], sizes = [2, 32], strides = [1, 1]} : vector<2x128xf32> to vector<2x32xf32>
    %82 = vector.extract_strided_slice %79 {offsets = [0, 64], sizes = [2, 32], strides = [1, 1]} : vector<2x128xf32> to vector<2x32xf32>
    %83 = vector.extract_strided_slice %79 {offsets = [0, 96], sizes = [2, 32], strides = [1, 1]} : vector<2x128xf32> to vector<2x32xf32>
    %84 = arith.mulf %81, %69 : vector<2x32xf32>
    %85 = arith.mulf %80, %82 : vector<2x32xf32>
    %86 = arith.addf %84, %85 : vector<2x32xf32>
    %87 = math.tanh %86 : vector<2x32xf32>
    %88 = arith.mulf %83, %87 : vector<2x32xf32>
    %89 = vector.extract_strided_slice %5 {offsets = [8, 0], sizes = [2, 128], strides = [1, 1]} : vector<16x128xf32> to vector<2x128xf32>
    %cst_17 = arith.constant dense<0.000000e+00> : vector<2x128xf32>
    %90 = tpu.matmul %88, %6, %cst_17 {dimension_numbers = #tpu.dot_dimension_numbers<[1], [0], [0], [1], [0, 0, 1, 1], [], []>} : vector<2x32xf32>, vector<32x128xf32>, vector<2x128xf32> -> vector<2x128xf32>
    %91 = arith.addf %89, %90 : vector<2x128xf32>
    %92 = math.tanh %91 : vector<2x128xf32>
    %93 = vector.broadcast %15 : vector<1x128xf32> to vector<2x128xf32>
    %94 = arith.mulf %92, %93 : vector<2x128xf32>
    %95 = vector.broadcast %18 : vector<1x128xf32> to vector<2x128xf32>
    %96 = arith.addf %94, %95 : vector<2x128xf32>
    %97 = vector.extract_strided_slice %96 {offsets = [0, 0], sizes = [2, 32], strides = [1, 1]} : vector<2x128xf32> to vector<2x32xf32>
    %98 = vector.extract_strided_slice %96 {offsets = [0, 32], sizes = [2, 32], strides = [1, 1]} : vector<2x128xf32> to vector<2x32xf32>
    %99 = vector.extract_strided_slice %96 {offsets = [0, 64], sizes = [2, 32], strides = [1, 1]} : vector<2x128xf32> to vector<2x32xf32>
    %100 = vector.extract_strided_slice %96 {offsets = [0, 96], sizes = [2, 32], strides = [1, 1]} : vector<2x128xf32> to vector<2x32xf32>
    %101 = arith.mulf %98, %86 : vector<2x32xf32>
    %102 = arith.mulf %97, %99 : vector<2x32xf32>
    %103 = arith.addf %101, %102 : vector<2x32xf32>
    %104 = math.tanh %103 : vector<2x32xf32>
    %105 = arith.mulf %100, %104 : vector<2x32xf32>
    %106 = vector.extract_strided_slice %5 {offsets = [10, 0], sizes = [2, 128], strides = [1, 1]} : vector<16x128xf32> to vector<2x128xf32>
    %cst_18 = arith.constant dense<0.000000e+00> : vector<2x128xf32>
    %107 = tpu.matmul %105, %6, %cst_18 {dimension_numbers = #tpu.dot_dimension_numbers<[1], [0], [0], [1], [0, 0, 1, 1], [], []>} : vector<2x32xf32>, vector<32x128xf32>, vector<2x128xf32> -> vector<2x128xf32>
    %108 = arith.addf %106, %107 : vector<2x128xf32>
    %109 = math.tanh %108 : vector<2x128xf32>
    %110 = vector.broadcast %15 : vector<1x128xf32> to vector<2x128xf32>
    %111 = arith.mulf %109, %110 : vector<2x128xf32>
    %112 = vector.broadcast %18 : vector<1x128xf32> to vector<2x128xf32>
    %113 = arith.addf %111, %112 : vector<2x128xf32>
    %114 = vector.extract_strided_slice %113 {offsets = [0, 0], sizes = [2, 32], strides = [1, 1]} : vector<2x128xf32> to vector<2x32xf32>
    %115 = vector.extract_strided_slice %113 {offsets = [0, 32], sizes = [2, 32], strides = [1, 1]} : vector<2x128xf32> to vector<2x32xf32>
    %116 = vector.extract_strided_slice %113 {offsets = [0, 64], sizes = [2, 32], strides = [1, 1]} : vector<2x128xf32> to vector<2x32xf32>
    %117 = vector.extract_strided_slice %113 {offsets = [0, 96], sizes = [2, 32], strides = [1, 1]} : vector<2x128xf32> to vector<2x32xf32>
    %118 = arith.mulf %115, %103 : vector<2x32xf32>
    %119 = arith.mulf %114, %116 : vector<2x32xf32>
    %120 = arith.addf %118, %119 : vector<2x32xf32>
    %121 = math.tanh %120 : vector<2x32xf32>
    %122 = arith.mulf %117, %121 : vector<2x32xf32>
    %123 = vector.extract_strided_slice %5 {offsets = [12, 0], sizes = [2, 128], strides = [1, 1]} : vector<16x128xf32> to vector<2x128xf32>
    %cst_19 = arith.constant dense<0.000000e+00> : vector<2x128xf32>
    %124 = tpu.matmul %122, %6, %cst_19 {dimension_numbers = #tpu.dot_dimension_numbers<[1], [0], [0], [1], [0, 0, 1, 1], [], []>} : vector<2x32xf32>, vector<32x128xf32>, vector<2x128xf32> -> vector<2x128xf32>
    %125 = arith.addf %123, %124 : vector<2x128xf32>
    %126 = math.tanh %125 : vector<2x128xf32>
    %127 = vector.broadcast %15 : vector<1x128xf32> to vector<2x128xf32>
    %128 = arith.mulf %126, %127 : vector<2x128xf32>
    %129 = vector.broadcast %18 : vector<1x128xf32> to vector<2x128xf32>
    %130 = arith.addf %128, %129 : vector<2x128xf32>
    %131 = vector.extract_strided_slice %130 {offsets = [0, 0], sizes = [2, 32], strides = [1, 1]} : vector<2x128xf32> to vector<2x32xf32>
    %132 = vector.extract_strided_slice %130 {offsets = [0, 32], sizes = [2, 32], strides = [1, 1]} : vector<2x128xf32> to vector<2x32xf32>
    %133 = vector.extract_strided_slice %130 {offsets = [0, 64], sizes = [2, 32], strides = [1, 1]} : vector<2x128xf32> to vector<2x32xf32>
    %134 = vector.extract_strided_slice %130 {offsets = [0, 96], sizes = [2, 32], strides = [1, 1]} : vector<2x128xf32> to vector<2x32xf32>
    %135 = arith.mulf %132, %120 : vector<2x32xf32>
    %136 = arith.mulf %131, %133 : vector<2x32xf32>
    %137 = arith.addf %135, %136 : vector<2x32xf32>
    %138 = math.tanh %137 : vector<2x32xf32>
    %139 = arith.mulf %134, %138 : vector<2x32xf32>
    %140 = vector.extract_strided_slice %5 {offsets = [14, 0], sizes = [2, 128], strides = [1, 1]} : vector<16x128xf32> to vector<2x128xf32>
    %cst_20 = arith.constant dense<0.000000e+00> : vector<2x128xf32>
    %141 = tpu.matmul %139, %6, %cst_20 {dimension_numbers = #tpu.dot_dimension_numbers<[1], [0], [0], [1], [0, 0, 1, 1], [], []>} : vector<2x32xf32>, vector<32x128xf32>, vector<2x128xf32> -> vector<2x128xf32>
    %142 = arith.addf %140, %141 : vector<2x128xf32>
    %143 = math.tanh %142 : vector<2x128xf32>
    %144 = vector.broadcast %15 : vector<1x128xf32> to vector<2x128xf32>
    %145 = arith.mulf %143, %144 : vector<2x128xf32>
    %146 = vector.broadcast %18 : vector<1x128xf32> to vector<2x128xf32>
    %147 = arith.addf %145, %146 : vector<2x128xf32>
    %148 = vector.extract_strided_slice %147 {offsets = [0, 0], sizes = [2, 32], strides = [1, 1]} : vector<2x128xf32> to vector<2x32xf32>
    %149 = vector.extract_strided_slice %147 {offsets = [0, 32], sizes = [2, 32], strides = [1, 1]} : vector<2x128xf32> to vector<2x32xf32>
    %150 = vector.extract_strided_slice %147 {offsets = [0, 64], sizes = [2, 32], strides = [1, 1]} : vector<2x128xf32> to vector<2x32xf32>
    %151 = vector.extract_strided_slice %147 {offsets = [0, 96], sizes = [2, 32], strides = [1, 1]} : vector<2x128xf32> to vector<2x32xf32>
    %152 = arith.mulf %149, %137 : vector<2x32xf32>
    %153 = arith.mulf %148, %150 : vector<2x32xf32>
    %154 = arith.addf %152, %153 : vector<2x32xf32>
    %155 = math.tanh %154 : vector<2x32xf32>
    %156 = arith.mulf %151, %155 : vector<2x32xf32>
    %157 = tpu.concatenate %37, %54, %71, %88, %105, %122, %139, %156 in 0 : vector<2x32xf32>, vector<2x32xf32>, vector<2x32xf32>, vector<2x32xf32>, vector<2x32xf32>, vector<2x32xf32>, vector<2x32xf32>, vector<2x32xf32> -> vector<16x32xf32>
    %c0_21 = arith.constant 0 : index
    %c0_22 = arith.constant 0 : index
    %158 = vector.load %arg4[%c0_21, %c0_22] : memref<32x32xf32, #tpu.memory_space<vmem>>, vector<32x32xf32>
    %cst_23 = arith.constant dense<0.000000e+00> : vector<16x32xf32>
    %159 = tpu.matmul %157, %158, %cst_23 {dimension_numbers = #tpu.dot_dimension_numbers<[1], [0], [0], [1], [0, 0, 1, 1], [], []>} : vector<16x32xf32>, vector<32x32xf32>, vector<16x32xf32> -> vector<16x32xf32>
    %c0_24 = arith.constant 0 : index
    %c0_25 = arith.constant 0 : index
    %160 = vector.load %arg5[%c0_24, %c0_25] : memref<1x32xf32, #tpu.memory_space<vmem>>, vector<1x32xf32>
    %161 = vector.broadcast %160 : vector<1x32xf32> to vector<16x32xf32>
    %162 = arith.addf %159, %161 : vector<16x32xf32>
    %cst_26 = arith.constant 0.000000e+00 : f32
    %163 = vector.broadcast %cst_26 : f32 to vector<16x32xf32>
    %164 = arith.maximumf %162, %163 : vector<16x32xf32>
    %c0_27 = arith.constant 0 : index
    %c0_28 = arith.constant 0 : index
    %165 = vector.load %arg6[%c0_27, %c0_28] : memref<32x32xf32, #tpu.memory_space<vmem>>, vector<32x32xf32>
    %cst_29 = arith.constant dense<0.000000e+00> : vector<16x32xf32>
    %166 = tpu.matmul %164, %165, %cst_29 {dimension_numbers = #tpu.dot_dimension_numbers<[1], [0], [0], [1], [0, 0, 1, 1], [], []>} : vector<16x32xf32>, vector<32x32xf32>, vector<16x32xf32> -> vector<16x32xf32>
    %c0_30 = arith.constant 0 : index
    %c0_31 = arith.constant 0 : index
    %167 = vector.load %arg7[%c0_30, %c0_31] : memref<1x32xf32, #tpu.memory_space<vmem>>, vector<1x32xf32>
    %168 = vector.broadcast %167 : vector<1x32xf32> to vector<16x32xf32>
    %169 = arith.addf %166, %168 : vector<16x32xf32>
    %cst_32 = arith.constant 0.000000e+00 : f32
    %170 = vector.broadcast %cst_32 : f32 to vector<16x32xf32>
    %171 = arith.maximumf %169, %170 : vector<16x32xf32>
    %c0_33 = arith.constant 0 : index
    %c0_34 = arith.constant 0 : index
    %172 = vector.load %arg8[%c0_33, %c0_34] : memref<1x32xf32, #tpu.memory_space<vmem>>, vector<1x32xf32>
    %173 = vector.broadcast %172 : vector<1x32xf32> to vector<16x32xf32>
    %174 = arith.mulf %171, %173 : vector<16x32xf32>
    %cst_35 = arith.constant dense<0.000000e+00> : vector<16xf32>
    %175 = vector.multi_reduction <add>, %174, %cst_35 [1] : vector<16x32xf32> to vector<16xf32>
    %176 = vector.shape_cast %175 : vector<16xf32> to vector<16x1xf32>
    %c0_36 = arith.constant 0 : index
    %c0_37 = arith.constant 0 : index
    %177 = vector.load %arg9[%c0_36, %c0_37] : memref<1x1xf32, #tpu.memory_space<vmem>>, vector<1x1xf32>
    %178 = vector.broadcast %177 : vector<1x1xf32> to vector<16x1xf32>
    %179 = arith.addf %176, %178 : vector<16x1xf32>
    %c0_38 = arith.constant 0 : index
    %c0_39 = arith.constant 0 : index
    %180 = vector.load %arg10[%c0_38, %c0_39] : memref<16x1xf32, #tpu.memory_space<vmem>>, vector<16x1xf32>
    tpu.vector_store %arg10[%c0_38, %c0_39], %179 {strides = array<i32>} : memref<16x1xf32, #tpu.memory_space<vmem>>, vector<16x1xf32>,
    return
  }
}

</mosaic_0001>

<llo_original>
// kernel: tpu_custom_call.1
$region0: #{tpu_custom_call.1}
  #allocation0 [shape = 'u32[]', space=smem, size = 0x4, offset = 0x4, fixed_abs, tag = 'smem constant byte address 0x4 - core index']
  #allocation1 [shape = 'u32[144,128]{1,0:T(1,128)}', space=vmem, size = 0x12000, scoped, tag = 'internal scratch']
  #allocation2 [shape = 'f32[1,1]{1,0:T(1,128)S(1)}', space=vmem, size = 0x200, scoped, tag = 'scoped memory for tpu_custom_call.1']
  %s0 = inlined_call_operand.hbm [shape: f32[16,56], index: 0, kind: input, shape index: {}]
  %s1 = inlined_call_operand.hbm [shape: f32[56,128], index: 1, kind: input, shape index: {}]
  %s2 = inlined_call_operand.hbm [shape: f32[32,128], index: 2, kind: input, shape index: {}]
  %s3 = inlined_call_operand.vmem [shape: f32[1,128], index: 3, kind: input, shape index: {}]
  %s4 = inlined_call_operand.hbm [shape: f32[32,32], index: 4, kind: input, shape index: {}]
  %s5 = inlined_call_operand.vmem [shape: f32[1,32], index: 5, kind: input, shape index: {}]
  %s6 = inlined_call_operand.hbm [shape: f32[32,32], index: 6, kind: input, shape index: {}]
  %s7 = inlined_call_operand.vmem [shape: f32[1,32], index: 7, kind: input, shape index: {}]
  %s8 = inlined_call_operand.vmem [shape: f32[1,32], index: 8, kind: input, shape index: {}]
  %s9 = inlined_call_operand.<no memory space> [shape: f32[1,1], index: 9, kind: input, shape index: {}]
  %s10 = inlined_call_operand.vmem [shape: f32[16,1], index: 10, kind: output, shape index: {}]
  %s11 = sld [smem:[#allocation0]]
  $region70: #{tpu_custom_call.1} parent=0
    _
  %s13 = ssub.s32 1, %s11
  %s14 = scalar_select 0, %s13, %s11
  %v15 = vstv %s9
  %16 = vst [vmem:[#allocation2] sm:$0x1] %v15
  $region1: #{tpu_custom_call.1} parent=0
    #allocation3 [shape = 'u8[8192]{0}', space=vmem, size = 0x2000, scoped, tag = 'input window, operand 0, single buffered']
    #allocation4 [shape = 's32[1]{0}', space=sflag, size = 0x4, scoped, tag = 'scoped memory for tpu_custom_call.1']
    #allocation5 [shape = 'u8[28672]{0}', space=vmem, size = 0x7000, scoped, tag = 'input window, operand 1, single buffered']
    #allocation6 [shape = 's32[1]{0}', space=sflag, size = 0x4, scoped, tag = 'scoped memory for tpu_custom_call.1']
    #allocation7 [shape = 'u8[16384]{0}', space=vmem, size = 0x4000, scoped, tag = 'input window, operand 2, single buffered']
    #allocation8 [shape = 'u8[16384]{0}', space=vmem, size = 0x4000, scoped, tag = 'input window, operand 4, single buffered']
    #allocation9 [shape = 's32[1]{0}', space=sflag, size = 0x4, scoped, tag = 'scoped memory for tpu_custom_call.1']
    #allocation10 [shape = 'u8[16384]{0}', space=vmem, size = 0x4000, scoped, tag = 'input window, operand 6, single buffered']
    %17 = vsyncpa [#allocation4], 0
    %18 = vsyncpa [#allocation6], 0
    %19 = vsyncpa [#allocation9], 0
    // Predicated region
    $region2: #{tpu_custom_call.1} parent=1 // pred_check
      _
    $region3: #{tpu_custom_call.1} parent=1 // pred_check_branch
      %21 = sbr.rel (0) target = $region5
    $region4: #{tpu_custom_call.1} parent=1 // pred_region
      %s23 = ssub.s32 256, 256
      %24 = vsyncadd [#allocation4], %s23
      %s25 = sshll.u32 [#allocation3], 4
      %s26 = int_to_ptr.vmem [resolvable:$true] %s25
      %31 = dma.hbm_to_vmem [thread:$0]  %s0, 256, %s26, [#allocation4], 128, 128, 8
    $region5: #{tpu_custom_call.1} parent=1 // pred_fallthru
      _
    // Predicated region
    $region6: #{tpu_custom_call.1} parent=1 // pred_check
      _
    $region7: #{tpu_custom_call.1} parent=1 // pred_check_branch
      %33 = sbr.rel (0) target = $region9
    $region8: #{tpu_custom_call.1} parent=1 // pred_region
      %s35 = ssub.s32 896, 896
      %36 = vsyncadd [#allocation6], %s35
      %s37 = sshll.u32 [#allocation5], 4
      %s38 = int_to_ptr.vmem [resolvable:$true] %s37
      %43 = dma.hbm_to_vmem [thread:$0]  %s1, 896, %s38, [#allocation6], 128, 128, 8
    $region9: #{tpu_custom_call.1} parent=1 // pred_fallthru
      _
    // Predicated region
    $region10: #{tpu_custom_call.1} parent=1 // pred_check
      _
    $region11: #{tpu_custom_call.1} parent=1 // pred_check_branch
      %45 = sbr.rel (0) target = $region13
    $region12: #{tpu_custom_call.1} parent=1 // pred_region
      %s47 = ssub.s32 512, 512
      %48 = vsyncadd [#allocation6], %s47
      %s49 = sshll.u32 [#allocation7], 4
      %s50 = int_to_ptr.vmem [resolvable:$true] %s49
      %55 = dma.hbm_to_vmem [thread:$0]  %s2, 512, %s50, [#allocation6], 128, 128, 8
    $region13: #{tpu_custom_call.1} parent=1 // pred_fallthru
      _
    // Predicated region
    $region14: #{tpu_custom_call.1} parent=1 // pred_check
      _
    $region15: #{tpu_custom_call.1} parent=1 // pred_check_branch
      %57 = sbr.rel (0) target = $region17
    $region16: #{tpu_custom_call.1} parent=1 // pred_region
      _
    $region17: #{tpu_custom_call.1} parent=1 // pred_fallthru
      _
    // Predicated region
    $region18: #{tpu_custom_call.1} parent=1 // pred_check
      _
    $region19: #{tpu_custom_call.1} parent=1 // pred_check_branch
      %59 = sbr.rel (0) target = $region21
    $region20: #{tpu_custom_call.1} parent=1 // pred_region
      %s61 = ssub.s32 512, 512
      %62 = vsyncadd [#allocation9], %s61
      %s63 = sshll.u32 [#allocation8], 4
      %s64 = int_to_ptr.vmem [resolvable:$true] %s63
      %69 = dma.hbm_to_vmem [thread:$0]  %s4, 512, %s64, [#allocation9], 128, 128, 8
    $region21: #{tpu_custom_call.1} parent=1 // pred_fallthru
      _
    // Predicated region
    $region22: #{tpu_custom_call.1} parent=1 // pred_check
      _
    $region23: #{tpu_custom_call.1} parent=1 // pred_check_branch
      %71 = sbr.rel (0) target = $region25
    $region24: #{tpu_custom_call.1} parent=1 // pred_region
      _
    $region25: #{tpu_custom_call.1} parent=1 // pred_fallthru
      _
    // Predicated region
    $region26: #{tpu_custom_call.1} parent=1 // pred_check
      _
    $region27: #{tpu_custom_call.1} parent=1 // pred_check_branch
      %73 = sbr.rel (0) target = $region29
    $region28: #{tpu_custom_call.1} parent=1 // pred_region
      %s75 = ssub.s32 512, 512
      %76 = vsyncadd [#allocation9], %s75
      %s77 = sshll.u32 [#allocation10], 4
      %s78 = int_to_ptr.vmem [resolvable:$true] %s77
      %83 = dma.hbm_to_vmem [thread:$0]  %s6, 512, %s78, [#allocation9], 128, 128, 8
    $region29: #{tpu_custom_call.1} parent=1 // pred_fallthru
      _
    // Predicated region
    $region30: #{tpu_custom_call.1} parent=1 // pred_check
      _
    $region31: #{tpu_custom_call.1} parent=1 // pred_check_branch
      %85 = sbr.rel (0) target = $region33
    $region32: #{tpu_custom_call.1} parent=1 // pred_region
      _
    $region33: #{tpu_custom_call.1} parent=1 // pred_fallthru
      _
    // Predicated region
    $region34: #{tpu_custom_call.1} parent=1 // pred_check
      _
    $region35: #{tpu_custom_call.1} parent=1 // pred_check_branch
      %87 = sbr.rel (0) target = $region37
    $region36: #{tpu_custom_call.1} parent=1 // pred_region
      _
    $region37: #{tpu_custom_call.1} parent=1 // pred_fallthru
      _
    // Predicated region
    $region38: #{tpu_custom_call.1} parent=1 // pred_check
      _
    $region39: #{tpu_custom_call.1} parent=1 // pred_check_branch
      %89 = sbr.rel (0) target = $region41
    $region40: #{tpu_custom_call.1} parent=1 // pred_region
      _
    $region41: #{tpu_custom_call.1} parent=1 // pred_fallthru
      _
    // Predicated region
    $region42: #{tpu_custom_call.1} parent=1 // pred_check
      _
    $region43: #{tpu_custom_call.1} parent=1 // pred_check_branch
      %91 = sbr.rel (0) target = $region45
    $region44: #{tpu_custom_call.1} parent=1 // pred_region
      %92 = dma.done [#allocation4], 256
    $region45: #{tpu_custom_call.1} parent=1 // pred_fallthru
      _
    // Predicated region
    $region46: #{tpu_custom_call.1} parent=1 // pred_check
      _
    $region47: #{tpu_custom_call.1} parent=1 // pred_check_branch
      %94 = sbr.rel (0) target = $region49
    $region48: #{tpu_custom_call.1} parent=1 // pred_region
      %95 = dma.done [#allocation6], 896
    $region49: #{tpu_custom_call.1} parent=1 // pred_fallthru
      _
    // Predicated region
    $region50: #{tpu_custom_call.1} parent=1 // pred_check
      _
    $region51: #{tpu_custom_call.1} parent=1 // pred_check_branch
      %97 = sbr.rel (0) target = $region53
    $region52: #{tpu_custom_call.1} parent=1 // pred_region
      %98 = dma.done [#allocation6], 512
    $region53: #{tpu_custom_call.1} parent=1 // pred_fallthru
      _
    // Predicated region
    $region54: #{tpu_custom_call.1} parent=1 // pred_check
      _
    $region55: #{tpu_custom_call.1} parent=1 // pred_check_branch
      %100 = sbr.rel (0) target = $region57
    $region56: #{tpu_custom_call.1} parent=1 // pred_region
      %101 = dma.done [#allocation9], 512
    $region57: #{tpu_custom_call.1} parent=1 // pred_fallthru
      _
    // Predicated region
    $region58: #{tpu_custom_call.1} parent=1 // pred_check
      _
    $region59: #{tpu_custom_call.1} parent=1 // pred_check_branch
      %103 = sbr.rel (0) target = $region61
    $region60: #{tpu_custom_call.1} parent=1 // pred_region
      %104 = dma.done [#allocation9], 512
    $region61: #{tpu_custom_call.1} parent=1 // pred_fallthru
      _
    %v105 = vld [vmem:[#allocation3] sm:$0xff]
    %v106 = vld [vmem:[#allocation3 + $0x8] sm:$0xff]
    %v107 = vld [vmem:[#allocation5] sm:$0xff]
    %v108 = vld [vmem:[#allocation5 + $0x8] sm:$0xff]
    %v109 = vld [vmem:[#allocation5 + $0x10] sm:$0xff]
    %v110 = vld [vmem:[#allocation5 + $0x18] sm:$0xff]
    %v111 = vld [vmem:[#allocation5 + $0x20] sm:$0xff]
    %v112 = vld [vmem:[#allocation5 + $0x28] sm:$0xff]
    %v113 = vld [vmem:[#allocation5 + $0x30] sm:$0xff]
    %v114 = vld [vmem:[%s3] sm:$0x1]
    %v116 = vlaneseq
    %v117 = vshrl.u32 %v116, 7
    %v118 = vsub.s32 0, %v117
    %v119 = vrot.slane %v114, %v118
    %vm121 = vcmask 457728
    %v123 = vsel %vm121, %v105, 0
    %v126 = vsel %vm121, %v106, 0
    %128 = vmatprep.subr.mxu0 0.0
    %129 = vmatpush1.msra.mxu0 %v107
    %130 = vmatprep.subr.mxu0 0.0
    %131 = vmatpush1.msra.mxu0 %v108
    %132 = vmatprep.subr.mxu0 0.0
    %133 = vmatpush1.msra.mxu0 %v109
    %134 = vmatprep.subr.mxu0 0.0
    %135 = vmatpush1.msra.mxu0 %v110
    %136 = vmatprep.subr.mxu0 0.0
    %137 = vmatpush1.msra.mxu0 %v111
    %138 = vmatprep.subr.mxu0 0.0
    %139 = vmatpush1.msra.mxu0 %v112
    %140 = vmatprep.subr.mxu0 0.0
    %141 = vmatpush1.msra.mxu0 %v113
    %142 = vmatprep.subr.mxu0 0.0
    %143 = vmatpush1.msra.mxu0 0.0
    %144 = vmatprep.subr.mxu0 0.0
    %145 = vmatpush1.msra.mxu0 0.0
    %146 = vmatprep.subr.mxu0 0.0
    %147 = vmatpush1.msra.mxu0 0.0
    %148 = vmatprep.subr.mxu0 0.0
    %149 = vmatpush1.msra.mxu0 0.0
    %150 = vmatprep.subr.mxu0 0.0
    %151 = vmatpush1.msra.mxu0 0.0
    %152 = vmatprep.subr.mxu0 0.0
    %153 = vmatpush1.msra.mxu0 0.0
    %154 = vmatprep.subr.mxu0 0.0
    %155 = vmatpush1.msra.mxu0 0.0
    %156 = vmatprep.subr.mxu0 0.0
    %157 = vmatpush1.msra.mxu0 0.0
    %158 = vmatprep.subr.mxu0 0.0
    %159 = vmatpush1.msra.mxu0 0.0
    %160 = vmatprep.subr.mxu0 0.0
    %161 = vmatpush1.msra.mxu0 0.0
    %162 = vmatprep.subr.mxu0 0.0
    %163 = vmatpush1.msra.mxu0 0.0
    %164 = vmatprep.subr.mxu0 0.0
    %165 = vmatpush1.msra.mxu0 0.0
    %166 = vmatprep.subr.mxu0 0.0
    %167 = vmatpush1.msra.mxu0 0.0
    %168 = vmatprep.subr.mxu0 0.0
    %169 = vmatpush1.msra.mxu0 0.0
    %170 = vmatprep.subr.mxu0 0.0
    %171 = vmatpush1.msra.mxu0 0.0
    %172 = vmatprep.subr.mxu0 0.0
    %173 = vmatpush1.msra.mxu0 0.0
    %174 = vmatprep.subr.mxu0 0.0
    %175 = vmatpush1.msra.mxu0 0.0
    %176 = vmatprep.subr.mxu0 0.0
    %177 = vmatpush1.msra.mxu0 0.0
    %178 = vmatprep.subr.mxu0 0.0
    %179 = vmatpush1.msra.mxu0 0.0
    %180 = vmatprep.subr.mxu0 0.0
    %181 = vmatpush1.msra.mxu0 0.0
    %182 = vmatprep.subr.mxu0 0.0
    %183 = vmatpush1.msra.mxu0 0.0
    %184 = vmatprep.subr.mxu0 0.0
    %185 = vmatpush1.msra.mxu0 0.0
    %186 = vmatprep.subr.mxu0 0.0
    %187 = vmatpush1.msra.mxu0 0.0
    %188 = vmatprep.subr.mxu0 0.0
    %189 = vmatpush1.msra.mxu0 0.0
    %190 = vmatprep.subr.mxu0 0.0
    %191 = vmatpush1.msra.mxu0 0.0
    %192 = vmatprep.mubr.f32.mxu0 0.0
    %193 = vmatmul.mubr.f32.gmra.mrb[0].mxu0 %v123
    %v194 = vpop.f32.mrb[0].mxu0
    %v195 = vadd.f32 %v119, %v194
    %v196 = vpop.f32.mrb[0].mxu0
    %197 = vmatprep.mubr.f32.mxu0 0.0
    %198 = vmatmul.mubr.f32.gmra.mrb[0].mxu0 %v126
    %v199 = vpop.f32.mrb[0].mxu0
    %v200 = vadd.f32 %v119, %v199
    %v201 = vpop.f32.mrb[0].mxu0
    %202 = vdwg.mxu0
    %v203 = vld [vmem:[#allocation7] sm:$0xff]
    %v204 = vld [vmem:[#allocation7 + $0x8] sm:$0xff]
    %v205 = vld [vmem:[#allocation7 + $0x10] sm:$0xff]
    %v206 = vld [vmem:[#allocation7 + $0x18] sm:$0xff]
    %v207 = vlaneseq
    %v208 = vand.u32 %v207, 127
    %vm209 = vcmp.ge.s32.totalorder %v208, 64
    %vm210 = vcmp.lt.s32.totalorder %v208, 96
    %vm211 = vmand %vm209, %vm210
    %v212 = vsel %vm211, 1.0, 0.5
    %v213 = vsel %vm211, 0.0, 0.5
    %vm214 = vcmask 261120
    %v216 = vsel %vm214, 0.0, 0
    %218 = vmatprep.subr.mxu0 0.0
    %219 = vmatpush1.msra.mxu0 %v203
    %220 = vmatprep.subr.mxu0 0.0
    %221 = vmatpush1.msra.mxu0 %v204
    %222 = vmatprep.subr.mxu0 0.0
    %223 = vmatpush1.msra.mxu0 %v205
    %224 = vmatprep.subr.mxu0 0.0
    %225 = vmatpush1.msra.mxu0 %v206
    %226 = vmatprep.subr.mxu0 0.0
    %227 = vmatpush1.msra.mxu0 0.0
    %228 = vmatprep.subr.mxu0 0.0
    %229 = vmatpush1.msra.mxu0 0.0
    %230 = vmatprep.subr.mxu0 0.0
    %231 = vmatpush1.msra.mxu0 0.0
    %232 = vmatprep.subr.mxu0 0.0
    %233 = vmatpush1.msra.mxu0 0.0
    %234 = vmatprep.subr.mxu0 0.0
    %235 = vmatpush1.msra.mxu0 0.0
    %236 = vmatprep.subr.mxu0 0.0
    %237 = vmatpush1.msra.mxu0 0.0
    %238 = vmatprep.subr.mxu0 0.0
    %239 = vmatpush1.msra.mxu0 0.0
    %240 = vmatprep.subr.mxu0 0.0
    %241 = vmatpush1.msra.mxu0 0.0
    %242 = vmatprep.subr.mxu0 0.0
    %243 = vmatpush1.msra.mxu0 0.0
    %244 = vmatprep.subr.mxu0 0.0
    %245 = vmatpush1.msra.mxu0 0.0
    %246 = vmatprep.subr.mxu0 0.0
    %247 = vmatpush1.msra.mxu0 0.0
    %248 = vmatprep.subr.mxu0 0.0
    %249 = vmatpush1.msra.mxu0 0.0
    %250 = vmatprep.subr.mxu0 0.0
    %251 = vmatpush1.msra.mxu0 0.0
    %252 = vmatprep.subr.mxu0 0.0
    %253 = vmatpush1.msra.mxu0 0.0
    %254 = vmatprep.subr.mxu0 0.0
    %255 = vmatpush1.msra.mxu0 0.0
    %256 = vmatprep.subr.mxu0 0.0
    %257 = vmatpush1.msra.mxu0 0.0
    %258 = vmatprep.subr.mxu0 0.0
    %259 = vmatpush1.msra.mxu0 0.0
    %260 = vmatprep.subr.mxu0 0.0
    %261 = vmatpush1.msra.mxu0 0.0
    %262 = vmatprep.subr.mxu0 0.0
    %263 = vmatpush1.msra.mxu0 0.0
    %264 = vmatprep.subr.mxu0 0.0
    %265 = vmatpush1.msra.mxu0 0.0
    %266 = vmatprep.subr.mxu0 0.0
    %267 = vmatpush1.msra.mxu0 0.0
    %268 = vmatprep.subr.mxu0 0.0
    %269 = vmatpush1.msra.mxu0 0.0
    %270 = vmatprep.subr.mxu0 0.0
    %271 = vmatpush1.msra.mxu0 0.0
    %272 = vmatprep.subr.mxu0 0.0
    %273 = vmatpush1.msra.mxu0 0.0
    %274 = vmatprep.subr.mxu0 0.0
    %275 = vmatpush1.msra.mxu0 0.0
    %276 = vmatprep.subr.mxu0 0.0
    %277 = vmatpush1.msra.mxu0 0.0
    %278 = vmatprep.subr.mxu0 0.0
    %279 = vmatpush1.msra.mxu0 0.0
    %280 = vmatprep.subr.mxu0 0.0
    %281 = vmatpush1.msra.mxu0 0.0
    %282 = vmatprep.mubr.f32.mxu0 0.0
    %283 = vmatmul.mubr.f32.gmra.mrb[0].mxu0 %v216
    %v284 = vpop.f32.mrb[0].mxu0
    %v285 = vadd.f32 0.0, %v284
    %v286 = vpop.f32.mrb[0].mxu0
    %287 = vdwg.mxu0
    %v288 = vadd.f32 %v195, %v285
    %v289 = vtanh.pop %v288
    %v290 = vmul.f32 %v289, %v212
    %v291 = vadd.f32 %v290, %v213
    %v292 = vmul.f32 %v291, 0.0
    %294 = vrot.lane.b32.xlu0 %v291, 64
    %v295 = vpop.permute.xlu0 %294
    %v297 = vmul.f32 %v291, %v295
    %299 = vrot.lane.b32.xlu0 %v297, 32
    %v300 = vpop.permute.xlu0 %299
    %v302 = vadd.f32 %v292, %v300
    %v303 = vtanh.pop %v302
    %305 = vrot.lane.b32.xlu0 %v303, 64
    %v306 = vpop.permute.xlu0 %305
    %v308 = vmul.f32 %v291, %v306
    %310 = vrot.lane.b32.xlu0 %v308, 32
    %v311 = vpop.permute.xlu0 %310
    %v312 = vsel %vm214, %v311, 0
    %314 = vmatprep.subr.mxu0 0.0
    %315 = vmatpush1.msra.mxu0 %v203
    %316 = vmatprep.subr.mxu0 0.0
    %317 = vmatpush1.msra.mxu0 %v204
    %318 = vmatprep.subr.mxu0 0.0
    %319 = vmatpush1.msra.mxu0 %v205
    %320 = vmatprep.subr.mxu0 0.0
    %321 = vmatpush1.msra.mxu0 %v206
    %322 = vmatprep.subr.mxu0 0.0
    %323 = vmatpush1.msra.mxu0 0.0
    %324 = vmatprep.subr.mxu0 0.0
    %325 = vmatpush1.msra.mxu0 0.0
    %326 = vmatprep.subr.mxu0 0.0
    %327 = vmatpush1.msra.mxu0 0.0
    %328 = vmatprep.subr.mxu0 0.0
    %329 = vmatpush1.msra.mxu0 0.0
    %330 = vmatprep.subr.mxu0 0.0
    %331 = vmatpush1.msra.mxu0 0.0
    %332 = vmatprep.subr.mxu0 0.0
    %333 = vmatpush1.msra.mxu0 0.0
    %334 = vmatprep.subr.mxu0 0.0
    %335 = vmatpush1.msra.mxu0 0.0
    %336 = vmatprep.subr.mxu0 0.0
    %337 = vmatpush1.msra.mxu0 0.0
    %338 = vmatprep.subr.mxu0 0.0
    %339 = vmatpush1.msra.mxu0 0.0
    %340 = vmatprep.subr.mxu0 0.0
    %341 = vmatpush1.msra.mxu0 0.0
    %342 = vmatprep.subr.mxu0 0.0
    %343 = vmatpush1.msra.mxu0 0.0
    %344 = vmatprep.subr.mxu0 0.0
    %345 = vmatpush1.msra.mxu0 0.0
    %346 = vmatprep.subr.mxu0 0.0
    %347 = vmatpush1.msra.mxu0 0.0
    %348 = vmatprep.subr.mxu0 0.0
    %349 = vmatpush1.msra.mxu0 0.0
    %350 = vmatprep.subr.mxu0 0.0
    %351 = vmatpush1.msra.mxu0 0.0
    %352 = vmatprep.subr.mxu0 0.0
    %353 = vmatpush1.msra.mxu0 0.0
    %354 = vmatprep.subr.mxu0 0.0
    %355 = vmatpush1.msra.mxu0 0.0
    %356 = vmatprep.subr.mxu0 0.0
    %357 = vmatpush1.msra.mxu0 0.0
    %358 = vmatprep.subr.mxu0 0.0
    %359 = vmatpush1.msra.mxu0 0.0
    %360 = vmatprep.subr.mxu0 0.0
    %361 = vmatpush1.msra.mxu0 0.0
    %362 = vmatprep.subr.mxu0 0.0
    %363 = vmatpush1.msra.mxu0 0.0
    %364 = vmatprep.subr.mxu0 0.0
    %365 = vmatpush1.msra.mxu0 0.0
    %366 = vmatprep.subr.mxu0 0.0
    %367 = vmatpush1.msra.mxu0 0.0
    %368 = vmatprep.subr.mxu0 0.0
    %369 = vmatpush1.msra.mxu0 0.0
    %370 = vmatprep.subr.mxu0 0.0
    %371 = vmatpush1.msra.mxu0 0.0
    %372 = vmatprep.subr.mxu0 0.0
    %373 = vmatpush1.msra.mxu0 0.0
    %374 = vmatprep.subr.mxu0 0.0
    %375 = vmatpush1.msra.mxu0 0.0
    %376 = vmatprep.subr.mxu0 0.0
    %377 = vmatpush1.msra.mxu0 0.0
    %378 = vmatprep.mubr.f32.mxu0 0.0
    %379 = vmatmul.mubr.f32.gmra.mrb[0].mxu0 %v312
    %v380 = vpop.f32.mrb[0].mxu0
    %v381 = vadd.f32 0.0, %v380
    %v382 = vpop.f32.mrb[0].mxu0
    %383 = vdwg.mxu0
    %v385 = vrot.slane %v381, 6
    %v387 = vadd.f32 %v195, %v385
    %v388 = vtanh.pop %v387
    %v389 = vmul.f32 %v388, %v212
    %v390 = vadd.f32 %v389, %v213
    %v392 = vrot.slane %v302, 6
    %v394 = vmul.f32 %v390, %v392
    %396 = vrot.lane.b32.xlu0 %v390, 64
    %v397 = vpop.permute.xlu0 %396
    %v399 = vmul.f32 %v390, %v397
    %401 = vrot.lane.b32.xlu0 %v399, 32
    %v402 = vpop.permute.xlu0 %401
    %v404 = vadd.f32 %v394, %v402
    %v405 = vtanh.pop %v404
    %407 = vrot.lane.b32.xlu0 %v405, 64
    %v408 = vpop.permute.xlu0 %407
    %v410 = vmul.f32 %v390, %v408
    %v412 = vrot.slane %v410, 2
    %413 = vrot.lane.b32.xlu0 %v412, 32
    %v414 = vpop.permute.xlu0 %413
    %v415 = vsel %vm214, %v414, 0
    %417 = vmatprep.subr.mxu0 0.0
    %418 = vmatpush1.msra.mxu0 %v203
    %419 = vmatprep.subr.mxu0 0.0
    %420 = vmatpush1.msra.mxu0 %v204
    %421 = vmatprep.subr.mxu0 0.0
    %422 = vmatpush1.msra.mxu0 %v205
    %423 = vmatprep.subr.mxu0 0.0
    %424 = vmatpush1.msra.mxu0 %v206
    %425 = vmatprep.subr.mxu0 0.0
    %426 = vmatpush1.msra.mxu0 0.0
    %427 = vmatprep.subr.mxu0 0.0
    %428 = vmatpush1.msra.mxu0 0.0
    %429 = vmatprep.subr.mxu0 0.0
    %430 = vmatpush1.msra.mxu0 0.0
    %431 = vmatprep.subr.mxu0 0.0
    %432 = vmatpush1.msra.mxu0 0.0
    %433 = vmatprep.subr.mxu0 0.0
    %434 = vmatpush1.msra.mxu0 0.0
    %435 = vmatprep.subr.mxu0 0.0
    %436 = vmatpush1.msra.mxu0 0.0
    %437 = vmatprep.subr.mxu0 0.0
    %438 = vmatpush1.msra.mxu0 0.0
    %439 = vmatprep.subr.mxu0 0.0
    %440 = vmatpush1.msra.mxu0 0.0
    %441 = vmatprep.subr.mxu0 0.0
    %442 = vmatpush1.msra.mxu0 0.0
    %443 = vmatprep.subr.mxu0 0.0
    %444 = vmatpush1.msra.mxu0 0.0
    %445 = vmatprep.subr.mxu0 0.0
    %446 = vmatpush1.msra.mxu0 0.0
    %447 = vmatprep.subr.mxu0 0.0
    %448 = vmatpush1.msra.mxu0 0.0
    %449 = vmatprep.subr.mxu0 0.0
    %450 = vmatpush1.msra.mxu0 0.0
    %451 = vmatprep.subr.mxu0 0.0
    %452 = vmatpush1.msra.mxu0 0.0
    %453 = vmatprep.subr.mxu0 0.0
    %454 = vmatpush1.msra.mxu0 0.0
    %455 = vmatprep.subr.mxu0 0.0
    %456 = vmatpush1.msra.mxu0 0.0
    %457 = vmatprep.subr.mxu0 0.0
    %458 = vmatpush1.msra.mxu0 0.0
    %459 = vmatprep.subr.mxu0 0.0
    %460 = vmatpush1.msra.mxu0 0.0
    %461 = vmatprep.subr.mxu0 0.0
    %462 = vmatpush1.msra.mxu0 0.0
    %463 = vmatprep.subr.mxu0 0.0
    %464 = vmatpush1.msra.mxu0 0.0
    %465 = vmatprep.subr.mxu0 0.0
    %466 = vmatpush1.msra.mxu0 0.0
    %467 = vmatprep.subr.mxu0 0.0
    %468 = vmatpush1.msra.mxu0 0.0
    %469 = vmatprep.subr.mxu0 0.0
    %470 = vmatpush1.msra.mxu0 0.0
    %471 = vmatprep.subr.mxu0 0.0
    %472 = vmatpush1.msra.mxu0 0.0
    %473 = vmatprep.subr.mxu0 0.0
    %474 = vmatpush1.msra.mxu0 0.0
    %475 = vmatprep.subr.mxu0 0.0
    %476 = vmatpush1.msra.mxu0 0.0
    %477 = vmatprep.subr.mxu0 0.0
    %478 = vmatpush1.msra.mxu0 0.0
    %479 = vmatprep.subr.mxu0 0.0
    %480 = vmatpush1.msra.mxu0 0.0
    %481 = vmatprep.mubr.f32.mxu0 0.0
    %482 = vmatmul.mubr.f32.gmra.mrb[0].mxu0 %v415
    %v483 = vpop.f32.mrb[0].mxu0
    %v484 = vadd.f32 0.0, %v483
    %v485 = vpop.f32.mrb[0].mxu0
    %486 = vdwg.mxu0
    %v488 = vrot.slane %v484, 4
    %v490 = vadd.f32 %v195, %v488
    %v491 = vtanh.pop %v490
    %v492 = vmul.f32 %v491, %v212
    %v493 = vadd.f32 %v492, %v213
    %v495 = vrot.slane %v404, 6
    %v497 = vmul.f32 %v493, %v495
    %499 = vrot.lane.b32.xlu0 %v493, 64
    %v500 = vpop.permute.xlu0 %499
    %v502 = vmul.f32 %v493, %v500
    %504 = vrot.lane.b32.xlu0 %v502, 32
    %v505 = vpop.permute.xlu0 %504
    %v507 = vadd.f32 %v497, %v505
    %v508 = vtanh.pop %v507
    %510 = vrot.lane.b32.xlu0 %v508, 64
    %v511 = vpop.permute.xlu0 %510
    %v513 = vmul.f32 %v493, %v511
    %v515 = vrot.slane %v513, 4
    %516 = vrot.lane.b32.xlu0 %v515, 32
    %v517 = vpop.permute.xlu0 %516
    %v518 = vsel %vm214, %v517, 0
    %520 = vmatprep.subr.mxu0 0.0
    %521 = vmatpush1.msra.mxu0 %v203
    %522 = vmatprep.subr.mxu0 0.0
    %523 = vmatpush1.msra.mxu0 %v204
    %524 = vmatprep.subr.mxu0 0.0
    %525 = vmatpush1.msra.mxu0 %v205
    %526 = vmatprep.subr.mxu0 0.0
    %527 = vmatpush1.msra.mxu0 %v206
    %528 = vmatprep.subr.mxu0 0.0
    %529 = vmatpush1.msra.mxu0 0.0
    %530 = vmatprep.subr.mxu0 0.0
    %531 = vmatpush1.msra.mxu0 0.0
    %532 = vmatprep.subr.mxu0 0.0
    %533 = vmatpush1.msra.mxu0 0.0
    %534 = vmatprep.subr.mxu0 0.0
    %535 = vmatpush1.msra.mxu0 0.0
    %536 = vmatprep.subr.mxu0 0.0
    %537 = vmatpush1.msra.mxu0 0.0
    %538 = vmatprep.subr.mxu0 0.0
    %539 = vmatpush1.msra.mxu0 0.0
    %540 = vmatprep.subr.mxu0 0.0
    %541 = vmatpush1.msra.mxu0 0.0
    %542 = vmatprep.subr.mxu0 0.0
    %543 = vmatpush1.msra.mxu0 0.0
    %544 = vmatprep.subr.mxu0 0.0
    %545 = vmatpush1.msra.mxu0 0.0
    %546 = vmatprep.subr.mxu0 0.0
    %547 = vmatpush1.msra.mxu0 0.0
    %548 = vmatprep.subr.mxu0 0.0
    %549 = vmatpush1.msra.mxu0 0.0
    %550 = vmatprep.subr.mxu0 0.0
    %551 = vmatpush1.msra.mxu0 0.0
    %552 = vmatprep.subr.mxu0 0.0
    %553 = vmatpush1.msra.mxu0 0.0
    %554 = vmatprep.subr.mxu0 0.0
    %555 = vmatpush1.msra.mxu0 0.0
    %556 = vmatprep.subr.mxu0 0.0
    %557 = vmatpush1.msra.mxu0 0.0
    %558 = vmatprep.subr.mxu0 0.0
    %559 = vmatpush1.msra.mxu0 0.0
    %560 = vmatprep.subr.mxu0 0.0
    %561 = vmatpush1.msra.mxu0 0.0
    %562 = vmatprep.subr.mxu0 0.0
    %563 = vmatpush1.msra.mxu0 0.0
    %564 = vmatprep.subr.mxu0 0.0
    %565 = vmatpush1.msra.mxu0 0.0
    %566 = vmatprep.subr.mxu0 0.0
    %567 = vmatpush1.msra.mxu0 0.0
    %568 = vmatprep.subr.mxu0 0.0
    %569 = vmatpush1.msra.mxu0 0.0
    %570 = vmatprep.subr.mxu0 0.0
    %571 = vmatpush1.msra.mxu0 0.0
    %572 = vmatprep.subr.mxu0 0.0
    %573 = vmatpush1.msra.mxu0 0.0
    %574 = vmatprep.subr.mxu0 0.0
    %575 = vmatpush1.msra.mxu0 0.0
    %576 = vmatprep.subr.mxu0 0.0
    %577 = vmatpush1.msra.mxu0 0.0
    %578 = vmatprep.subr.mxu0 0.0
    %579 = vmatpush1.msra.mxu0 0.0
    %580 = vmatprep.subr.mxu0 0.0
    %581 = vmatpush1.msra.mxu0 0.0
    %582 = vmatprep.subr.mxu0 0.0
    %583 = vmatpush1.msra.mxu0 0.0
    %584 = vmatprep.mubr.f32.mxu0 0.0
    %585 = vmatmul.mubr.f32.gmra.mrb[0].mxu0 %v518
    %v586 = vpop.f32.mrb[0].mxu0
    %v587 = vadd.f32 0.0, %v586
    %v588 = vpop.f32.mrb[0].mxu0
    %589 = vdwg.mxu0
    %v591 = vrot.slane %v587, 2
    %v593 = vadd.f32 %v195, %v591
    %v594 = vtanh.pop %v593
    %v595 = vmul.f32 %v594, %v212
    %v596 = vadd.f32 %v595, %v213
    %v598 = vrot.slane %v507, 6
    %v600 = vmul.f32 %v596, %v598
    %602 = vrot.lane.b32.xlu0 %v596, 64
    %v603 = vpop.permute.xlu0 %602
    %v605 = vmul.f32 %v596, %v603
    %607 = vrot.lane.b32.xlu0 %v605, 32
    %v608 = vpop.permute.xlu0 %607
    %v610 = vadd.f32 %v600, %v608
    %v611 = vtanh.pop %v610
    %613 = vrot.lane.b32.xlu0 %v611, 64
    %v614 = vpop.permute.xlu0 %613
    %v616 = vmul.f32 %v596, %v614
    %v618 = vrot.slane %v616, 6
    %619 = vrot.lane.b32.xlu0 %v618, 32
    %v620 = vpop.permute.xlu0 %619
    %v621 = vsel %vm214, %v620, 0
    %623 = vmatprep.subr.mxu0 0.0
    %624 = vmatpush1.msra.mxu0 %v203
    %625 = vmatprep.subr.mxu0 0.0
    %626 = vmatpush1.msra.mxu0 %v204
    %627 = vmatprep.subr.mxu0 0.0
    %628 = vmatpush1.msra.mxu0 %v205
    %629 = vmatprep.subr.mxu0 0.0
    %630 = vmatpush1.msra.mxu0 %v206
    %631 = vmatprep.subr.mxu0 0.0
    %632 = vmatpush1.msra.mxu0 0.0
    %633 = vmatprep.subr.mxu0 0.0
    %634 = vmatpush1.msra.mxu0 0.0
    %635 = vmatprep.subr.mxu0 0.0
    %636 = vmatpush1.msra.mxu0 0.0
    %637 = vmatprep.subr.mxu0 0.0
    %638 = vmatpush1.msra.mxu0 0.0
    %639 = vmatprep.subr.mxu0 0.0
    %640 = vmatpush1.msra.mxu0 0.0
    %641 = vmatprep.subr.mxu0 0.0
    %642 = vmatpush1.msra.mxu0 0.0
    %643 = vmatprep.subr.mxu0 0.0
    %644 = vmatpush1.msra.mxu0 0.0
    %645 = vmatprep.subr.mxu0 0.0
    %646 = vmatpush1.msra.mxu0 0.0
    %647 = vmatprep.subr.mxu0 0.0
    %648 = vmatpush1.msra.mxu0 0.0
    %649 = vmatprep.subr.mxu0 0.0
    %650 = vmatpush1.msra.mxu0 0.0
    %651 = vmatprep.subr.mxu0 0.0
    %652 = vmatpush1.msra.mxu0 0.0
    %653 = vmatprep.subr.mxu0 0.0
    %654 = vmatpush1.msra.mxu0 0.0
    %655 = vmatprep.subr.mxu0 0.0
    %656 = vmatpush1.msra.mxu0 0.0
    %657 = vmatprep.subr.mxu0 0.0
    %658 = vmatpush1.msra.mxu0 0.0
    %659 = vmatprep.subr.mxu0 0.0
    %660 = vmatpush1.msra.mxu0 0.0
    %661 = vmatprep.subr.mxu0 0.0
    %662 = vmatpush1.msra.mxu0 0.0
    %663 = vmatprep.subr.mxu0 0.0
    %664 = vmatpush1.msra.mxu0 0.0
    %665 = vmatprep.subr.mxu0 0.0
    %666 = vmatpush1.msra.mxu0 0.0
    %667 = vmatprep.subr.mxu0 0.0
    %668 = vmatpush1.msra.mxu0 0.0
    %669 = vmatprep.subr.mxu0 0.0
    %670 = vmatpush1.msra.mxu0 0.0
    %671 = vmatprep.subr.mxu0 0.0
    %672 = vmatpush1.msra.mxu0 0.0
    %673 = vmatprep.subr.mxu0 0.0
    %674 = vmatpush1.msra.mxu0 0.0
    %675 = vmatprep.subr.mxu0 0.0
    %676 = vmatpush1.msra.mxu0 0.0
    %677 = vmatprep.subr.mxu0 0.0
    %678 = vmatpush1.msra.mxu0 0.0
    %679 = vmatprep.subr.mxu0 0.0
    %680 = vmatpush1.msra.mxu0 0.0
    %681 = vmatprep.subr.mxu0 0.0
    %682 = vmatpush1.msra.mxu0 0.0
    %683 = vmatprep.subr.mxu0 0.0
    %684 = vmatpush1.msra.mxu0 0.0
    %685 = vmatprep.subr.mxu0 0.0
    %686 = vmatpush1.msra.mxu0 0.0
    %687 = vmatprep.mubr.f32.mxu0 0.0
    %688 = vmatmul.mubr.f32.gmra.mrb[0].mxu0 %v621
    %v689 = vpop.f32.mrb[0].mxu0
    %v690 = vadd.f32 0.0, %v689
    %v691 = vpop.f32.mrb[0].mxu0
    %692 = vdwg.mxu0
    %v693 = vadd.f32 %v200, %v690
    %v694 = vtanh.pop %v693
    %v695 = vmul.f32 %v694, %v212
    %v696 = vadd.f32 %v695, %v213
    %v698 = vrot.slane %v610, 6
    %v700 = vmul.f32 %v696, %v698
    %702 = vrot.lane.b32.xlu0 %v696, 64
    %v703 = vpop.permute.xlu0 %702
    %v705 = vmul.f32 %v696, %v703
    %707 = vrot.lane.b32.xlu0 %v705, 32
    %v708 = vpop.permute.xlu0 %707
    %v710 = vadd.f32 %v700, %v708
    %v711 = vtanh.pop %v710
    %713 = vrot.lane.b32.xlu0 %v711, 64
    %v714 = vpop.permute.xlu0 %713
    %v716 = vmul.f32 %v696, %v714
    %718 = vrot.lane.b32.xlu0 %v716, 32
    %v719 = vpop.permute.xlu0 %718
    %v720 = vsel %vm214, %v719, 0
    %722 = vmatprep.subr.mxu0 0.0
    %723 = vmatpush1.msra.mxu0 %v203
    %724 = vmatprep.subr.mxu0 0.0
    %725 = vmatpush1.msra.mxu0 %v204
    %726 = vmatprep.subr.mxu0 0.0
    %727 = vmatpush1.msra.mxu0 %v205
    %728 = vmatprep.subr.mxu0 0.0
    %729 = vmatpush1.msra.mxu0 %v206
    %730 = vmatprep.subr.mxu0 0.0
    %731 = vmatpush1.msra.mxu0 0.0
    %732 = vmatprep.subr.mxu0 0.0
    %733 = vmatpush1.msra.mxu0 0.0
    %734 = vmatprep.subr.mxu0 0.0
    %735 = vmatpush1.msra.mxu0 0.0
    %736 = vmatprep.subr.mxu0 0.0
    %737 = vmatpush1.msra.mxu0 0.0
    %738 = vmatprep.subr.mxu0 0.0
    %739 = vmatpush1.msra.mxu0 0.0
    %740 = vmatprep.subr.mxu0 0.0
    %741 = vmatpush1.msra.mxu0 0.0
    %742 = vmatprep.subr.mxu0 0.0
    %743 = vmatpush1.msra.mxu0 0.0
    %744 = vmatprep.subr.mxu0 0.0
    %745 = vmatpush1.msra.mxu0 0.0
    %746 = vmatprep.subr.mxu0 0.0
    %747 = vmatpush1.msra.mxu0 0.0
    %748 = vmatprep.subr.mxu0 0.0
    %749 = vmatpush1.msra.mxu0 0.0
    %750 = vmatprep.subr.mxu0 0.0
    %751 = vmatpush1.msra.mxu0 0.0
    %752 = vmatprep.subr.mxu0 0.0
    %753 = vmatpush1.msra.mxu0 0.0
    %754 = vmatprep.subr.mxu0 0.0
    %755 = vmatpush1.msra.mxu0 0.0
    %756 = vmatprep.subr.mxu0 0.0
    %757 = vmatpush1.msra.mxu0 0.0
    %758 = vmatprep.subr.mxu0 0.0
    %759 = vmatpush1.msra.mxu0 0.0
    %760 = vmatprep.subr.mxu0 0.0
    %761 = vmatpush1.msra.mxu0 0.0
    %762 = vmatprep.subr.mxu0 0.0
    %763 = vmatpush1.msra.mxu0 0.0
    %764 = vmatprep.subr.mxu0 0.0
    %765 = vmatpush1.msra.mxu0 0.0
    %766 = vmatprep.subr.mxu0 0.0
    %767 = vmatpush1.msra.mxu0 0.0
    %768 = vmatprep.subr.mxu0 0.0
    %769 = vmatpush1.msra.mxu0 0.0
    %770 = vmatprep.subr.mxu0 0.0
    %771 = vmatpush1.msra.mxu0 0.0
    %772 = vmatprep.subr.mxu0 0.0
    %773 = vmatpush1.msra.mxu0 0.0
    %774 = vmatprep.subr.mxu0 0.0
    %775 = vmatpush1.msra.mxu0 0.0
    %776 = vmatprep.subr.mxu0 0.0
    %777 = vmatpush1.msra.mxu0 0.0
    %778 = vmatprep.subr.mxu0 0.0
    %779 = vmatpush1.msra.mxu0 0.0
    %780 = vmatprep.subr.mxu0 0.0
    %781 = vmatpush1.msra.mxu0 0.0
    %782 = vmatprep.subr.mxu0 0.0
    %783 = vmatpush1.msra.mxu0 0.0
    %784 = vmatprep.subr.mxu0 0.0
    %785 = vmatpush1.msra.mxu0 0.0
    %786 = vmatprep.mubr.f32.mxu0 0.0
    %787 = vmatmul.mubr.f32.gmra.mrb[0].mxu0 %v720
    %v788 = vpop.f32.mrb[0].mxu0
    %v789 = vadd.f32 0.0, %v788
    %v790 = vpop.f32.mrb[0].mxu0
    %791 = vdwg.mxu0
    %v793 = vrot.slane %v789, 6
    %v795 = vadd.f32 %v200, %v793
    %v796 = vtanh.pop %v795
    %v797 = vmul.f32 %v796, %v212
    %v798 = vadd.f32 %v797, %v213
    %v800 = vrot.slane %v710, 6
    %v802 = vmul.f32 %v798, %v800
    %804 = vrot.lane.b32.xlu0 %v798, 64
    %v805 = vpop.permute.xlu0 %804
    %v807 = vmul.f32 %v798, %v805
    %809 = vrot.lane.b32.xlu0 %v807, 32
    %v810 = vpop.permute.xlu0 %809
    %v812 = vadd.f32 %v802, %v810
    %v813 = vtanh.pop %v812
    %815 = vrot.lane.b32.xlu0 %v813, 64
    %v816 = vpop.permute.xlu0 %815
    %v818 = vmul.f32 %v798, %v816
    %v820 = vrot.slane %v818, 2
    %821 = vrot.lane.b32.xlu0 %v820, 32
    %v822 = vpop.permute.xlu0 %821
    %v823 = vsel %vm214, %v822, 0
    %825 = vmatprep.subr.mxu0 0.0
    %826 = vmatpush1.msra.mxu0 %v203
    %827 = vmatprep.subr.mxu0 0.0
    %828 = vmatpush1.msra.mxu0 %v204
    %829 = vmatprep.subr.mxu0 0.0
    %830 = vmatpush1.msra.mxu0 %v205
    %831 = vmatprep.subr.mxu0 0.0
    %832 = vmatpush1.msra.mxu0 %v206
    %833 = vmatprep.subr.mxu0 0.0
    %834 = vmatpush1.msra.mxu0 0.0
    %835 = vmatprep.subr.mxu0 0.0
    %836 = vmatpush1.msra.mxu0 0.0
    %837 = vmatprep.subr.mxu0 0.0
    %838 = vmatpush1.msra.mxu0 0.0
    %839 = vmatprep.subr.mxu0 0.0
    %840 = vmatpush1.msra.mxu0 0.0
    %841 = vmatprep.subr.mxu0 0.0
    %842 = vmatpush1.msra.mxu0 0.0
    %843 = vmatprep.subr.mxu0 0.0
    %844 = vmatpush1.msra.mxu0 0.0
    %845 = vmatprep.subr.mxu0 0.0
    %846 = vmatpush1.msra.mxu0 0.0
    %847 = vmatprep.subr.mxu0 0.0
    %848 = vmatpush1.msra.mxu0 0.0
    %849 = vmatprep.subr.mxu0 0.0
    %850 = vmatpush1.msra.mxu0 0.0
    %851 = vmatprep.subr.mxu0 0.0
    %852 = vmatpush1.msra.mxu0 0.0
    %853 = vmatprep.subr.mxu0 0.0
    %854 = vmatpush1.msra.mxu0 0.0
    %855 = vmatprep.subr.mxu0 0.0
    %856 = vmatpush1.msra.mxu0 0.0
    %857 = vmatprep.subr.mxu0 0.0
    %858 = vmatpush1.msra.mxu0 0.0
    %859 = vmatprep.subr.mxu0 0.0
    %860 = vmatpush1.msra.mxu0 0.0
    %861 = vmatprep.subr.mxu0 0.0
    %862 = vmatpush1.msra.mxu0 0.0
    %863 = vmatprep.subr.mxu0 0.0
    %864 = vmatpush1.msra.mxu0 0.0
    %865 = vmatprep.subr.mxu0 0.0
    %866 = vmatpush1.msra.mxu0 0.0
    %867 = vmatprep.subr.mxu0 0.0
    %868 = vmatpush1.msra.mxu0 0.0
    %869 = vmatprep.subr.mxu0 0.0
    %870 = vmatpush1.msra.mxu0 0.0
    %871 = vmatprep.subr.mxu0 0.0
    %872 = vmatpush1.msra.mxu0 0.0
    %873 = vmatprep.subr.mxu0 0.0
    %874 = vmatpush1.msra.mxu0 0.0
    %875 = vmatprep.subr.mxu0 0.0
    %876 = vmatpush1.msra.mxu0 0.0
    %877 = vmatprep.subr.mxu0 0.0
    %878 = vmatpush1.msra.mxu0 0.0
    %879 = vmatprep.subr.mxu0 0.0
    %880 = vmatpush1.msra.mxu0 0.0
    %881 = vmatprep.subr.mxu0 0.0
    %882 = vmatpush1.msra.mxu0 0.0
    %883 = vmatprep.subr.mxu0 0.0
    %884 = vmatpush1.msra.mxu0 0.0
    %885 = vmatprep.subr.mxu0 0.0
    %886 = vmatpush1.msra.mxu0 0.0
    %887 = vmatprep.subr.mxu0 0.0
    %888 = vmatpush1.msra.mxu0 0.0
    %889 = vmatprep.mubr.f32.mxu0 0.0
    %890 = vmatmul.mubr.f32.gmra.mrb[0].mxu0 %v823
    %v891 = vpop.f32.mrb[0].mxu0
    %v892 = vadd.f32 0.0, %v891
    %v893 = vpop.f32.mrb[0].mxu0
    %894 = vdwg.mxu0
    %v896 = vrot.slane %v892, 4
    %v898 = vadd.f32 %v200, %v896
    %v899 = vtanh.pop %v898
    %v900 = vmul.f32 %v899, %v212
    %v901 = vadd.f32 %v900, %v213
    %v903 = vrot.slane %v812, 6
    %v905 = vmul.f32 %v901, %v903
    %907 = vrot.lane.b32.xlu0 %v901, 64
    %v908 = vpop.permute.xlu0 %907
    %v910 = vmul.f32 %v901, %v908
    %912 = vrot.lane.b32.xlu0 %v910, 32
    %v913 = vpop.permute.xlu0 %912
    %v915 = vadd.f32 %v905, %v913
    %v916 = vtanh.pop %v915
    %918 = vrot.lane.b32.xlu0 %v916, 64
    %v919 = vpop.permute.xlu0 %918
    %v921 = vmul.f32 %v901, %v919
    %v923 = vrot.slane %v921, 4
    %924 = vrot.lane.b32.xlu0 %v923, 32
    %v925 = vpop.permute.xlu0 %924
    %v926 = vsel %vm214, %v925, 0
    %928 = vmatprep.subr.mxu0 0.0
    %929 = vmatpush1.msra.mxu0 %v203
    %930 = vmatprep.subr.mxu0 0.0
    %931 = vmatpush1.msra.mxu0 %v204
    %932 = vmatprep.subr.mxu0 0.0
    %933 = vmatpush1.msra.mxu0 %v205
    %934 = vmatprep.subr.mxu0 0.0
    %935 = vmatpush1.msra.mxu0 %v206
    %936 = vmatprep.subr.mxu0 0.0
    %937 = vmatpush1.msra.mxu0 0.0
    %938 = vmatprep.subr.mxu0 0.0
    %939 = vmatpush1.msra.mxu0 0.0
    %940 = vmatprep.subr.mxu0 0.0
    %941 = vmatpush1.msra.mxu0 0.0
    %942 = vmatprep.subr.mxu0 0.0
    %943 = vmatpush1.msra.mxu0 0.0
    %944 = vmatprep.subr.mxu0 0.0
    %945 = vmatpush1.msra.mxu0 0.0
    %946 = vmatprep.subr.mxu0 0.0
    %947 = vmatpush1.msra.mxu0 0.0
    %948 = vmatprep.subr.mxu0 0.0
    %949 = vmatpush1.msra.mxu0 0.0
    %950 = vmatprep.subr.mxu0 0.0
    %951 = vmatpush1.msra.mxu0 0.0
    %952 = vmatprep.subr.mxu0 0.0
    %953 = vmatpush1.msra.mxu0 0.0
    %954 = vmatprep.subr.mxu0 0.0
    %955 = vmatpush1.msra.mxu0 0.0
    %956 = vmatprep.subr.mxu0 0.0
    %957 = vmatpush1.msra.mxu0 0.0
    %958 = vmatprep.subr.mxu0 0.0
    %959 = vmatpush1.msra.mxu0 0.0
    %960 = vmatprep.subr.mxu0 0.0
    %961 = vmatpush1.msra.mxu0 0.0
    %962 = vmatprep.subr.mxu0 0.0
    %963 = vmatpush1.msra.mxu0 0.0
    %964 = vmatprep.subr.mxu0 0.0
    %965 = vmatpush1.msra.mxu0 0.0
    %966 = vmatprep.subr.mxu0 0.0
    %967 = vmatpush1.msra.mxu0 0.0
    %968 = vmatprep.subr.mxu0 0.0
    %969 = vmatpush1.msra.mxu0 0.0
    %970 = vmatprep.subr.mxu0 0.0
    %971 = vmatpush1.msra.mxu0 0.0
    %972 = vmatprep.subr.mxu0 0.0
    %973 = vmatpush1.msra.mxu0 0.0
    %974 = vmatprep.subr.mxu0 0.0
    %975 = vmatpush1.msra.mxu0 0.0
    %976 = vmatprep.subr.mxu0 0.0
    %977 = vmatpush1.msra.mxu0 0.0
    %978 = vmatprep.subr.mxu0 0.0
    %979 = vmatpush1.msra.mxu0 0.0
    %980 = vmatprep.subr.mxu0 0.0
    %981 = vmatpush1.msra.mxu0 0.0
    %982 = vmatprep.subr.mxu0 0.0
    %983 = vmatpush1.msra.mxu0 0.0
    %984 = vmatprep.subr.mxu0 0.0
    %985 = vmatpush1.msra.mxu0 0.0
    %986 = vmatprep.subr.mxu0 0.0
    %987 = vmatpush1.msra.mxu0 0.0
    %988 = vmatprep.subr.mxu0 0.0
    %989 = vmatpush1.msra.mxu0 0.0
    %990 = vmatprep.subr.mxu0 0.0
    %991 = vmatpush1.msra.mxu0 0.0
    %992 = vmatprep.mubr.f32.mxu0 0.0
    %993 = vmatmul.mubr.f32.gmra.mrb[0].mxu0 %v926
    %v994 = vpop.f32.mrb[0].mxu0
    %v995 = vadd.f32 0.0, %v994
    %v996 = vpop.f32.mrb[0].mxu0
    %997 = vdwg.mxu0
    %v999 = vrot.slane %v995, 2
    %v1001 = vadd.f32 %v200, %v999
    %v1002 = vtanh.pop %v1001
    %v1003 = vmul.f32 %v1002, %v212
    %v1004 = vadd.f32 %v1003, %v213
    %v1006 = vrot.slane %v915, 6
    %v1008 = vmul.f32 %v1004, %v1006
    %1010 = vrot.lane.b32.xlu0 %v1004, 64
    %v1011 = vpop.permute.xlu0 %1010
    %v1013 = vmul.f32 %v1004, %v1011
    %1015 = vrot.lane.b32.xlu0 %v1013, 32
    %v1016 = vpop.permute.xlu0 %1015
    %v1018 = vadd.f32 %v1008, %v1016
    %v1019 = vtanh.pop %v1018
    %1021 = vrot.lane.b32.xlu0 %v1019, 64
    %v1022 = vpop.permute.xlu0 %1021
    %v1024 = vmul.f32 %v1004, %v1022
    %vm1025 = vcmask 1041408
    %v1026 = vsel %vm1025, %v308, %v410
    %vm1027 = vcmask 1043456
    %v1028 = vsel %vm1027, %v1026, %v513
    %vm1029 = vcmask 1045504
    %v1030 = vsel %vm1029, %v1028, %v616
    %v1031 = vsel %vm1025, %v716, %v818
    %v1032 = vsel %vm1027, %v1031, %v921
    %v1033 = vsel %vm1029, %v1032, %v1024
    %v1034 = vld [vmem:[#allocation8] sm:$0xff]
    %v1035 = vld [vmem:[#allocation8 + $0x8] sm:$0xff]
    %v1036 = vld [vmem:[#allocation8 + $0x10] sm:$0xff]
    %v1037 = vld [vmem:[#allocation8 + $0x18] sm:$0xff]
    %v1038 = vld [vmem:[%s5] sm:$0x1]
    %v1040 = vlaneseq
    %v1041 = vshrl.u32 %v1040, 7
    %v1042 = vsub.s32 0, %v1041
    %v1043 = vrot.slane %v1038, %v1042
    %1047 = vrot.lane.b32.xlu0 %v1030, 32
    %v1048 = vpop.permute.xlu0 %1047
    %1049 = vrot.lane.b32.xlu0 %v1033, 32
    %v1050 = vpop.permute.xlu0 %1049
    %v1051 = vsel %vm214, %v1048, 0
    %v1053 = vsel %vm214, %v1050, 0
    %1055 = vmatprep.subr.mxu0 0.0
    %1056 = vmatpush1.msra.mxu0 %v1034
    %1057 = vmatprep.subr.mxu0 0.0
    %1058 = vmatpush1.msra.mxu0 %v1035
    %1059 = vmatprep.subr.mxu0 0.0
    %1060 = vmatpush1.msra.mxu0 %v1036
    %1061 = vmatprep.subr.mxu0 0.0
    %1062 = vmatpush1.msra.mxu0 %v1037
    %1063 = vmatprep.subr.mxu0 0.0
    %1064 = vmatpush1.msra.mxu0 0.0
    %1065 = vmatprep.subr.mxu0 0.0
    %1066 = vmatpush1.msra.mxu0 0.0
    %1067 = vmatprep.subr.mxu0 0.0
    %1068 = vmatpush1.msra.mxu0 0.0
    %1069 = vmatprep.subr.mxu0 0.0
    %1070 = vmatpush1.msra.mxu0 0.0
    %1071 = vmatprep.subr.mxu0 0.0
    %1072 = vmatpush1.msra.mxu0 0.0
    %1073 = vmatprep.subr.mxu0 0.0
    %1074 = vmatpush1.msra.mxu0 0.0
    %1075 = vmatprep.subr.mxu0 0.0
    %1076 = vmatpush1.msra.mxu0 0.0
    %1077 = vmatprep.subr.mxu0 0.0
    %1078 = vmatpush1.msra.mxu0 0.0
    %1079 = vmatprep.subr.mxu0 0.0
    %1080 = vmatpush1.msra.mxu0 0.0
    %1081 = vmatprep.subr.mxu0 0.0
    %1082 = vmatpush1.msra.mxu0 0.0
    %1083 = vmatprep.subr.mxu0 0.0
    %1084 = vmatpush1.msra.mxu0 0.0
    %1085 = vmatprep.subr.mxu0 0.0
    %1086 = vmatpush1.msra.mxu0 0.0
    %1087 = vmatprep.subr.mxu0 0.0
    %1088 = vmatpush1.msra.mxu0 0.0
    %1089 = vmatprep.subr.mxu0 0.0
    %1090 = vmatpush1.msra.mxu0 0.0
    %1091 = vmatprep.subr.mxu0 0.0
    %1092 = vmatpush1.msra.mxu0 0.0
    %1093 = vmatprep.subr.mxu0 0.0
    %1094 = vmatpush1.msra.mxu0 0.0
    %1095 = vmatprep.subr.mxu0 0.0
    %1096 = vmatpush1.msra.mxu0 0.0
    %1097 = vmatprep.subr.mxu0 0.0
    %1098 = vmatpush1.msra.mxu0 0.0
    %1099 = vmatprep.subr.mxu0 0.0
    %1100 = vmatpush1.msra.mxu0 0.0
    %1101 = vmatprep.subr.mxu0 0.0
    %1102 = vmatpush1.msra.mxu0 0.0
    %1103 = vmatprep.subr.mxu0 0.0
    %1104 = vmatpush1.msra.mxu0 0.0
    %1105 = vmatprep.subr.mxu0 0.0
    %1106 = vmatpush1.msra.mxu0 0.0
    %1107 = vmatprep.subr.mxu0 0.0
    %1108 = vmatpush1.msra.mxu0 0.0
    %1109 = vmatprep.subr.mxu0 0.0
    %1110 = vmatpush1.msra.mxu0 0.0
    %1111 = vmatprep.subr.mxu0 0.0
    %1112 = vmatpush1.msra.mxu0 0.0
    %1113 = vmatprep.subr.mxu0 0.0
    %1114 = vmatpush1.msra.mxu0 0.0
    %1115 = vmatprep.subr.mxu0 0.0
    %1116 = vmatpush1.msra.mxu0 0.0
    %1117 = vmatprep.subr.mxu0 0.0
    %1118 = vmatpush1.msra.mxu0 0.0
    %1119 = vmatprep.mubr.f32.mxu0 0.0
    %1120 = vmatmul.mubr.f32.gmra.mrb[0].mxu0 %v1051
    %v1121 = vpop.f32.mrb[0].mxu0
    %v1122 = vadd.f32 %v1043, %v1121
    %v1123 = vpop.f32.mrb[0].mxu0
    %1124 = vmatprep.mubr.f32.mxu0 0.0
    %1125 = vmatmul.mubr.f32.gmra.mrb[0].mxu0 %v1053
    %v1126 = vpop.f32.mrb[0].mxu0
    %v1127 = vadd.f32 %v1043, %v1126
    %v1128 = vpop.f32.mrb[0].mxu0
    %1129 = vdwg.mxu0
    %v1130 = vmax.f32 %v1122, 0.0
    %v1131 = vmax.f32 %v1127, 0.0
    %v1132 = vld [vmem:[#allocation10] sm:$0xff]
    %v1133 = vld [vmem:[#allocation10 + $0x8] sm:$0xff]
    %v1134 = vld [vmem:[#allocation10 + $0x10] sm:$0xff]
    %v1135 = vld [vmem:[#allocation10 + $0x18] sm:$0xff]
    %v1136 = vld [vmem:[%s7] sm:$0x1]
    %v1138 = vlaneseq
    %v1139 = vshrl.u32 %v1138, 7
    %v1140 = vsub.s32 0, %v1139
    %v1141 = vrot.slane %v1136, %v1140
    %v1144 = vsel %vm214, %v1130, 0
    %v1147 = vsel %vm214, %v1131, 0
    %1149 = vmatprep.subr.mxu0 0.0
    %1150 = vmatpush1.msra.mxu0 %v1132
    %1151 = vmatprep.subr.mxu0 0.0
    %1152 = vmatpush1.msra.mxu0 %v1133
    %1153 = vmatprep.subr.mxu0 0.0
    %1154 = vmatpush1.msra.mxu0 %v1134
    %1155 = vmatprep.subr.mxu0 0.0
    %1156 = vmatpush1.msra.mxu0 %v1135
    %1157 = vmatprep.subr.mxu0 0.0
    %1158 = vmatpush1.msra.mxu0 0.0
    %1159 = vmatprep.subr.mxu0 0.0
    %1160 = vmatpush1.msra.mxu0 0.0
    %1161 = vmatprep.subr.mxu0 0.0
    %1162 = vmatpush1.msra.mxu0 0.0
    %1163 = vmatprep.subr.mxu0 0.0
    %1164 = vmatpush1.msra.mxu0 0.0
    %1165 = vmatprep.subr.mxu0 0.0
    %1166 = vmatpush1.msra.mxu0 0.0
    %1167 = vmatprep.subr.mxu0 0.0
    %1168 = vmatpush1.msra.mxu0 0.0
    %1169 = vmatprep.subr.mxu0 0.0
    %1170 = vmatpush1.msra.mxu0 0.0
    %1171 = vmatprep.subr.mxu0 0.0
    %1172 = vmatpush1.msra.mxu0 0.0
    %1173 = vmatprep.subr.mxu0 0.0
    %1174 = vmatpush1.msra.mxu0 0.0
    %1175 = vmatprep.subr.mxu0 0.0
    %1176 = vmatpush1.msra.mxu0 0.0
    %1177 = vmatprep.subr.mxu0 0.0
    %1178 = vmatpush1.msra.mxu0 0.0
    %1179 = vmatprep.subr.mxu0 0.0
    %1180 = vmatpush1.msra.mxu0 0.0
    %1181 = vmatprep.subr.mxu0 0.0
    %1182 = vmatpush1.msra.mxu0 0.0
    %1183 = vmatprep.subr.mxu0 0.0
    %1184 = vmatpush1.msra.mxu0 0.0
    %1185 = vmatprep.subr.mxu0 0.0
    %1186 = vmatpush1.msra.mxu0 0.0
    %1187 = vmatprep.subr.mxu0 0.0
    %1188 = vmatpush1.msra.mxu0 0.0
    %1189 = vmatprep.subr.mxu0 0.0
    %1190 = vmatpush1.msra.mxu0 0.0
    %1191 = vmatprep.subr.mxu0 0.0
    %1192 = vmatpush1.msra.mxu0 0.0
    %1193 = vmatprep.subr.mxu0 0.0
    %1194 = vmatpush1.msra.mxu0 0.0
    %1195 = vmatprep.subr.mxu0 0.0
    %1196 = vmatpush1.msra.mxu0 0.0
    %1197 = vmatprep.subr.mxu0 0.0
    %1198 = vmatpush1.msra.mxu0 0.0
    %1199 = vmatprep.subr.mxu0 0.0
    %1200 = vmatpush1.msra.mxu0 0.0
    %1201 = vmatprep.subr.mxu0 0.0
    %1202 = vmatpush1.msra.mxu0 0.0
    %1203 = vmatprep.subr.mxu0 0.0
    %1204 = vmatpush1.msra.mxu0 0.0
    %1205 = vmatprep.subr.mxu0 0.0
    %1206 = vmatpush1.msra.mxu0 0.0
    %1207 = vmatprep.subr.mxu0 0.0
    %1208 = vmatpush1.msra.mxu0 0.0
    %1209 = vmatprep.subr.mxu0 0.0
    %1210 = vmatpush1.msra.mxu0 0.0
    %1211 = vmatprep.subr.mxu0 0.0
    %1212 = vmatpush1.msra.mxu0 0.0
    %1213 = vmatprep.mubr.f32.mxu0 0.0
    %1214 = vmatmul.mubr.f32.gmra.mrb[0].mxu0 %v1144
    %v1215 = vpop.f32.mrb[0].mxu0
    %v1216 = vadd.f32 %v1141, %v1215
    %v1217 = vpop.f32.mrb[0].mxu0
    %1218 = vmatprep.mubr.f32.mxu0 0.0
    %1219 = vmatmul.mubr.f32.gmra.mrb[0].mxu0 %v1147
    %v1220 = vpop.f32.mrb[0].mxu0
    %v1221 = vadd.f32 %v1141, %v1220
    %v1222 = vpop.f32.mrb[0].mxu0
    %1223 = vdwg.mxu0
    %v1224 = vmax.f32 %v1216, 0.0
    %v1225 = vmax.f32 %v1221, 0.0
    %v1226 = vld [vmem:[%s8] sm:$0x1]
    %v1228 = vlaneseq
    %v1229 = vshrl.u32 %v1228, 7
    %v1230 = vsub.s32 0, %v1229
    %v1231 = vrot.slane %v1226, %v1230
    %v1233 = vmul.f32 %v1224, %v1231
    %v1234 = vmul.f32 %v1225, %v1231
    %v1235 = vsel %vm214, %v1233, 0.0
    %1236 = vadd.xlane.f32.xlu0 %v1235
    %v1237 = vpop.xlane.xlu0 %1236
    %v1238 = vsel %vm214, %v1234, 0.0
    %1239 = vadd.xlane.f32.xlu0 %v1238
    %v1240 = vpop.xlane.xlu0 %1239
    %v1241 = vld [vmem:[#allocation2] sm:$0x1]
    %v1243 = vlaneseq
    %v1244 = vshrl.u32 %v1243, 7
    %v1245 = vsub.s32 0, %v1244
    %v1246 = vrot.slane %v1241, %v1245
    %v1248 = vadd.f32 %v1237, %v1246
    %v1249 = vadd.f32 %v1240, %v1246
    %vm1250 = vcmask 7168
    %1251 = vst.msk [vmem:[%s10] sm:$0xff] %vm1250, %v1248
    %1252 = vst.msk [vmem:[%s10 + $0x8] sm:$0xff] %vm1250, %v1249
    // Predicated region
    $region62: #{tpu_custom_call.1} parent=1 // pred_check
      _
    $region63: #{tpu_custom_call.1} parent=1 // pred_check_branch
      %1254 = sbr.rel (0) target = $region65
    $region64: #{tpu_custom_call.1} parent=1 // pred_region
      _
    $region65: #{tpu_custom_call.1} parent=1 // pred_fallthru
      _
    // Predicated region
    $region66: #{tpu_custom_call.1} parent=1 // pred_check
      _
    $region67: #{tpu_custom_call.1} parent=1 // pred_check_branch
      %1256 = sbr.rel (0) target = $region69
    $region68: #{tpu_custom_call.1} parent=1 // pred_region
      _
    $region69: #{tpu_custom_call.1} parent=1 // pred_fallthru
      _
    %1257 = vsyncpa [#allocation4], 1
    %1258 = vsyncpa [#allocation6], 1
    %1259 = vsyncpa [#allocation9], 1

</llo_original>
